<compile_context>
chip_gen: v7x
topology: tpu7x:2x2x1
jax: 0.10.0
libtpu: 0.0.40
codegen_flags: <defaults>
</compile_context>

<pallas_src>
import jax
import jax.numpy as jnp
from jax.experimental import pallas as pl
from jax.experimental.pallas import tpu as pltpu


WEIGHT_ORDER = ('Wg1', 'Wg2', 'Wd', 'Wmulv', 'We1', 'We2', 'We3',
                'Whead', 'W1', 'W2', 'W3')
BIAS_ORDER = ('bd', 'bmulv', 'be1', 'be2', 'be3', 'bhead', 'b1', 'b2', 'b3')


def init_params(key, *, num_nodes, bbx_size, num_obj_classes, latent_dims,
                hidden1=32, hidden2=16, hidden3=128, label_size=1):
    """Synthetic parameters, already in the fused layouts used by the kernel.

    Fusions (all mathematically identical to concat-then-matmul of the
    per-piece weights of the original module):
      Wd    = [Wdense_nodes ; Wdense_cls]                 (N*h2 + C, h3)
      Wmulv = [Wmu | Wlogvar]                             (h3, 2L)
      Whead = rows [nodes|cls|latent_obj|z], cols [bbx|lbl]
      W1    = rows [nodes|cls|latent_obj]                 (dense decoder layer 1)
    The adjacency-gating Linear of the original module is omitted: its output
    is never used in the forward pass (dead work).
    """
    N, F, C, L = num_nodes, bbx_size, num_obj_classes, latent_dims
    h1, h2, h3 = hidden1, hidden2, hidden3
    keys = iter(jax.random.split(key, 32))

    def w(shape, scale=0.1):
        return (scale * jax.random.normal(next(keys), shape)).astype(jnp.float32)

    def b(shape):
        return (0.01 * jax.random.normal(next(keys), shape)).astype(jnp.float32)

    return dict(
        # GCN encoder: gc(F->h1), gc(h1->h2), dense(N*h2 + C -> h3), heads(h3 -> 2L)
        Wg1=w((F, h1)), Wg2=w((h1, h2)),
        Wd=w((N * h2 + C, h3)), bd=b((1, h3)),
        Wmulv=w((h3, 2 * L)), bmulv=b((1, 2 * L)),
        # dense encoder: F -> h1 -> h2 -> L
        We1=w((F, h1)), be1=b((1, h1)),
        We2=w((h1, h2)), be2=b((1, h2)),
        We3=w((h2, L)), be3=b((1, L)),
        # GCN decoder heads: (N + C + 2L) -> (N*F | N*label), both sigmoid
        Whead=w((N + C + 2 * L, N * F + N * label_size)),
        bhead=b((1, N * F + N * label_size)),
        # dense decoder: (N + C + L) -> h2 -> h1 -> F
        W1=w((N + C + L, h2)), b1=b((1, h2)),
        W2=w((h2, h1)), b2=b((1, h1)),
        W3=w((h1, F)), b3=b((1, F)),
    )


def pack_params(params, compute_dtype=jnp.bfloat16):
    """Pack all weights into one (rows, 128k) buffer and all biases into one
    (n_bias, 128k) buffer; kernel reads them via free static ref slices."""
    itemsize = jnp.dtype(compute_dtype).itemsize
    row_align = 8 * max(1, 4 // itemsize)          # sublane tile for the dtype

    max_cols = max(params[n].shape[1] for n in WEIGHT_ORDER)
    pack_cols = ((max_cols + 127) // 128) * 128

    blocks, w_layout, r0 = [], {}, 0
    for name in WEIGHT_ORDER:
        w = jnp.asarray(params[name], dtype=compute_dtype)
        rows, cols = w.shape
        rows_pad = ((rows + row_align - 1) // row_align) * row_align
        blocks.append(jnp.pad(w, ((0, rows_pad - rows), (0, pack_cols - cols))))
        w_layout[name] = (r0, rows, cols)
        r0 += rows_pad
    Wpack = jnp.concatenate(blocks, axis=0)

    max_blen = max(params[n].size for n in BIAS_ORDER)
    bcols = ((max_blen + 127) // 128) * 128
    brows, b_layout = [], {}
    for k, name in enumerate(BIAS_ORDER):
        v = jnp.asarray(params[name], jnp.float32).reshape(-1)
        b_layout[name] = (k, v.shape[0])
        brows.append(jnp.pad(v, (0, bcols - v.shape[0])))
    bpack = jnp.stack(brows, axis=0)

    return dict(Wpack=Wpack, bpack=bpack, w_layout=w_layout, b_layout=b_layout,
                compute_dtype=compute_dtype)


def two_stage_autoencoder_forward(packed, E, X_part, X_obj, nodes, obj_class,
                                  *, num_nodes, num_obj_classes, label_size=1):
    f32 = jnp.float32
    Wpack, bpack = packed['Wpack'], packed['bpack']
    wl, bl = packed['w_layout'], packed['b_layout']
    cdt = packed['compute_dtype']

    B = E.shape[0]
    N, C = num_nodes, num_obj_classes
    F = wl['Wg1'][1]
    h2 = wl['Wg2'][2]
    h3 = wl['Wd'][2]
    L = wl['Wmulv'][2] // 2
    HW = N * F + N * label_size                    # width of the fused head
    TOTAL = HW + F + 2 * L                         # fused output slab width
    assert wl['Whead'][2] == HW

    # glue reshapes (same as torch.reshape in the forward); (B,1,X) layout keeps
    # the trailing two BlockSpec dims equal to the full array dims.
    E = E.astype(f32)
    Xp = X_part.astype(f32)
    Xo3 = X_obj.reshape(B, 1, F).astype(f32)
    nodes3 = nodes.reshape(B, 1, N).astype(f32)
    cls3 = obj_class.reshape(B, 1, C).astype(f32)

    def kernel(E_ref, Xp_ref, Xo_ref, nodes_ref, cls_ref, Wp_ref, bp_ref,
               out_ref, enc_scr, cond_scr):
        def W(name):                               # static ref slice (free)
            r0, rows, cols = wl[name]
            return Wp_ref[r0:r0 + rows, 0:cols]

        def Bv(name):
            k, length = bl[name]
            return bp_ref[k:k + 1, 0:length]

        def mm(a, w):                              # bf16 inputs, f32 accumulate
            return jnp.dot(a.astype(cdt), w.astype(cdt),
                           preferred_element_type=f32)

        Ea = E_ref[...]                            # (N, N)
        Xpart = Xp_ref[...]                        # (N, F)
        Xo = Xo_ref[...]                           # (1, F)
        nd = nodes_ref[...]                        # (1, N)
        cls = cls_ref[...]                         # (1, C)

        # NOTE: the original forward also computes sigmoid(Linear(X_part)) as a
        # "gating adjacency" but never uses it -> dead work, removed.

        # --- GCN encoder: two propagation layers (plain 2-D matmuls) ---
        AX = mm(Ea, Xpart)                          # (N, F)
        H1 = jax.nn.relu(mm(AX, W('Wg1')))          # (N, h1)
        AH1 = mm(Ea, H1)                            # (N, h1)
        H2 = jax.nn.relu(mm(AH1, W('Wg2')))         # (N, h2)

        # pack H2 rows into lane slices -> (1, N*h2), append cls ->
        # single K = N*h2 + C matmul for the dense layer.
        for n in range(N):
            enc_scr[:, n * h2:(n + 1) * h2] = H2[n:n + 1, :]
        enc_scr[:, N * h2:N * h2 + C] = cls
        hd = jax.nn.relu(mm(enc_scr[...], W('Wd')) + Bv('bd'))      # (1, h3)

        zmlv = mm(hd, W('Wmulv')) + Bv('bmulv')     # (1, 2L) = [z_mean | z_logvar]
        z = zmlv[:, 0:L]                            # variational=False -> z = z_mean

        # --- dense encoder on X_obj ---
        e1 = jax.nn.relu(mm(Xo, W('We1')) + Bv('be1'))
        e2 = jax.nn.relu(mm(e1, W('We2')) + Bv('be2'))
        latent_obj = mm(e2, W('We3')) + Bv('be3')   # (1, L)

        # --- conditioned_z = [nodes | cls | latent_obj | z] in lane order ---
        cond_scr[:, 0:N] = nd
        cond_scr[:, N:N + C] = cls
        cond_scr[:, N + C:N + C + L] = latent_obj
        cond_scr[:, N + C + L:N + C + 2 * L] = z
        cond_z = cond_scr[...]                      # (1, N+C+2L)
        cond_obj = cond_scr[:, 0:N + C + L]         # (1, N+C+L)

        # --- fused GCN-decoder heads: [x_bbx | x_lbl] in one matmul ---
        heads = jax.nn.sigmoid(mm(cond_z, W('Whead')) + Bv('bhead'))  # (1, HW)

        # --- dense decoder on conditioned_obj_latent (coupling=False) ---
        d1 = jax.nn.relu(mm(cond_obj, W('W1')) + Bv('b1'))
        d2 = jax.nn.relu(mm(d1, W('W2')) + Bv('b2'))
        x_obj = jax.nn.sigmoid(mm(d2, W('W3')) + Bv('b3'))            # (1, F)

        # --- single lane-dense output slab ---
        out_ref[:, 0:HW] = heads
        out_ref[:, HW:HW + F] = x_obj
        out_ref[:, HW + F:HW + F + 2 * L] = zmlv

    Rw, Cw = Wpack.shape
    Rb, Cb = bpack.shape

    out3 = pl.pallas_call(
        kernel,
        out_shape=jax.ShapeDtypeStruct((B, 1, TOTAL), f32),
        grid=(B,),
        in_specs=[
            pl.BlockSpec((None, N, N), lambda b: (b, 0, 0)),   # E
            pl.BlockSpec((None, N, F), lambda b: (b, 0, 0)),   # X_part
            pl.BlockSpec((None, 1, F), lambda b: (b, 0, 0)),   # X_obj
            pl.BlockSpec((None, 1, N), lambda b: (b, 0, 0)),   # nodes
            pl.BlockSpec((None, 1, C), lambda b: (b, 0, 0)),   # obj_class
            pl.BlockSpec((Rw, Cw), lambda b: (0, 0)),          # packed weights
            pl.BlockSpec((Rb, Cb), lambda b: (0, 0)),          # packed biases
        ],
        out_specs=pl.BlockSpec((None, 1, TOTAL), lambda b: (b, 0, 0)),
        scratch_shapes=[
            pltpu.VMEM((1, N * h2 + C), f32),                  # [H2 packed | cls]
            pltpu.VMEM((1, N + C + 2 * L), f32),               # conditioned_z
        ],
        compiler_params=pltpu.CompilerParams(
            dimension_semantics=("parallel",),
            vmem_limit_bytes=32 * 1024 * 1024),
    )(E, Xp, Xo3, nodes3, cls3, Wpack, bpack)

    out = out3.reshape(B, TOTAL)
    x_bbx = out[:, :N * F].reshape(B, N, F)
    x_lbl = out[:, N * F:HW].reshape(B, N, label_size)
    x_obj_bbx = out[:, HW:HW + F]
    z_mean = out[:, HW + F:HW + F + L]
    z_logvar = out[:, HW + F + L:HW + F + 2 * L]
    # torch forward returns (x_bbx, x_obj_bbx, x_lbl, z_mean, z_logvar)
    return x_bbx, x_obj_bbx, x_lbl, z_mean, z_logvar


if __name__ == "__main__":
    # small shapes
    B, N, F, C, L = 2, 8, 4, 4, 8
    label_size = 1

    key = jax.random.PRNGKey(0)
    k_e, k_xp, k_xo, k_n, k_c, k_p = jax.random.split(key, 6)

    E = jax.random.uniform(k_e, (B, N, N), dtype=jnp.float32)          # adjacency
    X_part = jax.random.normal(k_xp, (B, N, F), dtype=jnp.float32)     # part bboxes
    X_obj = jax.random.normal(k_xo, (B, F), dtype=jnp.float32)         # object bbox
    nodes = jax.random.uniform(k_n, (B, N, 1), dtype=jnp.float32)      # node labels
    obj_class = jax.random.uniform(k_c, (B, 1, C), dtype=jnp.float32)  # object class

    params = init_params(k_p, num_nodes=N, bbx_size=F, num_obj_classes=C,
                         latent_dims=L, hidden1=32, hidden2=16, hidden3=128,
                         label_size=label_size)
    packed = pack_params(params, compute_dtype=jnp.bfloat16)

    outs = two_stage_autoencoder_forward(
        packed, E, X_part, X_obj, nodes, obj_class,
        num_nodes=N, num_obj_classes=C, label_size=label_size)
    outs = jax.block_until_ready(outs)

    x_bbx, x_obj_bbx, x_lbl, z_mean, z_logvar = outs
    assert x_bbx.shape == (B, N, F)
    assert x_obj_bbx.shape == (B, F)
    assert x_lbl.shape == (B, N, label_size)
    assert z_mean.shape == (B, L) and z_logvar.shape == (B, L)
    for o in outs:
        assert bool(jnp.all(jnp.isfinite(o)))
    print("KERNEL_OK")
</pallas_src>

<mosaic_0001>
module attributes {stable_mosaic.version = 11 : i64} {
  func.func @kernel(%arg0: i32, %arg1: memref<1x8x8xf32, #tpu.memory_space<vmem>>, %arg2: memref<1x8x4xf32, #tpu.memory_space<vmem>>, %arg3: memref<1x1x4xf32, #tpu.memory_space<vmem>>, %arg4: memref<1x1x8xf32, #tpu.memory_space<vmem>>, %arg5: memref<1x1x4xf32, #tpu.memory_space<vmem>>, %arg6: memref<496x128xbf16, #tpu.memory_space<vmem>>, %arg7: memref<9x128xf32, #tpu.memory_space<vmem>>, %arg8: memref<1x1x60xf32, #tpu.memory_space<vmem>>, %arg9: memref<1x132xf32, #tpu.memory_space<vmem>>, %arg10: memref<1x28xf32, #tpu.memory_space<vmem>>) attributes {dimension_semantics = [#tpu.dimension_semantics<parallel>], iteration_bounds = array<i64: 2>, scalar_prefetch = 0 : i64, scratch_operands = 2 : i64, tpu.core_type = #tpu.core_type<tc>, window_params = [{transform_indices = @transform_0, window_bounds = array<i64: 1, 8, 8>}, {transform_indices = @transform_1, window_bounds = array<i64: 1, 8, 4>}, {transform_indices = @transform_2, window_bounds = array<i64: 1, 1, 4>}, {transform_indices = @transform_3, window_bounds = array<i64: 1, 1, 8>}, {transform_indices = @transform_4, window_bounds = array<i64: 1, 1, 4>}, {pipeline_mode = #tpu.pipeline_mode<synchronous>, transform_indices = @transform_5, window_bounds = array<i64: 496, 128>}, {pipeline_mode = #tpu.pipeline_mode<synchronous>, transform_indices = @transform_6, window_bounds = array<i64: 9, 128>}, {transform_indices = @transform_7, window_bounds = array<i64: 1, 1, 60>}]} {
    %c0 = arith.constant 0 : index
    %c0_0 = arith.constant 0 : index
    %c0_1 = arith.constant 0 : index
    %0 = vector.load %arg1[%c0, %c0_0, %c0_1] : memref<1x8x8xf32, #tpu.memory_space<vmem>>, vector<1x8x8xf32>
    %1 = vector.shape_cast %0 : vector<1x8x8xf32> to vector<8x8xf32>
    %c0_2 = arith.constant 0 : index
    %c0_3 = arith.constant 0 : index
    %c0_4 = arith.constant 0 : index
    %2 = vector.load %arg2[%c0_2, %c0_3, %c0_4] : memref<1x8x4xf32, #tpu.memory_space<vmem>>, vector<1x8x4xf32>
    %3 = vector.shape_cast %2 : vector<1x8x4xf32> to vector<8x4xf32>
    %c0_5 = arith.constant 0 : index
    %c0_6 = arith.constant 0 : index
    %c0_7 = arith.constant 0 : index
    %4 = vector.load %arg3[%c0_5, %c0_6, %c0_7] : memref<1x1x4xf32, #tpu.memory_space<vmem>>, vector<1x1x4xf32>
    %5 = vector.shape_cast %4 : vector<1x1x4xf32> to vector<1x4xf32>
    %c0_8 = arith.constant 0 : index
    %c0_9 = arith.constant 0 : index
    %c0_10 = arith.constant 0 : index
    %6 = vector.load %arg4[%c0_8, %c0_9, %c0_10] : memref<1x1x8xf32, #tpu.memory_space<vmem>>, vector<1x1x8xf32>
    %7 = vector.shape_cast %6 : vector<1x1x8xf32> to vector<1x8xf32>
    %c0_11 = arith.constant 0 : index
    %c0_12 = arith.constant 0 : index
    %c0_13 = arith.constant 0 : index
    %8 = vector.load %arg5[%c0_11, %c0_12, %c0_13] : memref<1x1x4xf32, #tpu.memory_space<vmem>>, vector<1x1x4xf32>
    %9 = vector.shape_cast %8 : vector<1x1x4xf32> to vector<1x4xf32>
    %10 = arith.truncf %1 : vector<8x8xf32> to vector<8x8xbf16>
    %11 = arith.truncf %3 : vector<8x4xf32> to vector<8x4xbf16>
    %cst = arith.constant dense<0.000000e+00> : vector<8x4xf32>
    %12 = tpu.matmul %10, %11, %cst {dimension_numbers = #tpu.dot_dimension_numbers<[1], [0], [0], [1], [0, 0, 1, 1], [], []>} : vector<8x8xbf16>, vector<8x4xbf16>, vector<8x4xf32> -> vector<8x4xf32>
    %c0_14 = arith.constant 0 : index
    %c0_15 = arith.constant 0 : index
    %13 = vector.load %arg6[%c0_14, %c0_15] : memref<496x128xbf16, #tpu.memory_space<vmem>>, vector<4x32xbf16>
    %14 = arith.truncf %12 : vector<8x4xf32> to vector<8x4xbf16>
    %cst_16 = arith.constant dense<0.000000e+00> : vector<8x32xf32>
    %15 = tpu.matmul %14, %13, %cst_16 {dimension_numbers = #tpu.dot_dimension_numbers<[1], [0], [0], [1], [0, 0, 1, 1], [], []>} : vector<8x4xbf16>, vector<4x32xbf16>, vector<8x32xf32> -> vector<8x32xf32>
    %cst_17 = arith.constant 0.000000e+00 : f32
    %16 = vector.broadcast %cst_17 : f32 to vector<8x32xf32>
    %17 = arith.maximumf %15, %16 : vector<8x32xf32>
    %18 = arith.truncf %1 : vector<8x8xf32> to vector<8x8xbf16>
    %19 = arith.truncf %17 : vector<8x32xf32> to vector<8x32xbf16>
    %cst_18 = arith.constant dense<0.000000e+00> : vector<8x32xf32>
    %20 = tpu.matmul %18, %19, %cst_18 {dimension_numbers = #tpu.dot_dimension_numbers<[1], [0], [0], [1], [0, 0, 1, 1], [], []>} : vector<8x8xbf16>, vector<8x32xbf16>, vector<8x32xf32> -> vector<8x32xf32>
    %c16 = arith.constant 16 : index
    %c0_19 = arith.constant 0 : index
    %21 = vector.load %arg6[%c16, %c0_19] : memref<496x128xbf16, #tpu.memory_space<vmem>>, vector<32x16xbf16>
    %22 = arith.truncf %20 : vector<8x32xf32> to vector<8x32xbf16>
    %cst_20 = arith.constant dense<0.000000e+00> : vector<8x16xf32>
    %23 = tpu.matmul %22, %21, %cst_20 {dimension_numbers = #tpu.dot_dimension_numbers<[1], [0], [0], [1], [0, 0, 1, 1], [], []>} : vector<8x32xbf16>, vector<32x16xbf16>, vector<8x16xf32> -> vector<8x16xf32>
    %cst_21 = arith.constant 0.000000e+00 : f32
    %24 = vector.broadcast %cst_21 : f32 to vector<8x16xf32>
    %25 = arith.maximumf %23, %24 : vector<8x16xf32>
    %26 = vector.extract_strided_slice %25 {offsets = [0, 0], sizes = [1, 16], strides = [1, 1]} : vector<8x16xf32> to vector<1x16xf32>
    %c0_22 = arith.constant 0 : index
    %c0_23 = arith.constant 0 : index
    %27 = vector.load %arg9[%c0_22, %c0_23] : memref<1x132xf32, #tpu.memory_space<vmem>>, vector<1x16xf32>
    tpu.vector_store %arg9[%c0_22, %c0_23], %26 {strides = array<i32>} : memref<1x132xf32, #tpu.memory_space<vmem>>, vector<1x16xf32>,
    %28 = vector.extract_strided_slice %25 {offsets = [1, 0], sizes = [1, 16], strides = [1, 1]} : vector<8x16xf32> to vector<1x16xf32>
    %c0_24 = arith.constant 0 : index
    %c16_25 = arith.constant 16 : index
    %29 = vector.load %arg9[%c0_24, %c16_25] : memref<1x132xf32, #tpu.memory_space<vmem>>, vector<1x16xf32>
    tpu.vector_store %arg9[%c0_24, %c16_25], %28 {strides = array<i32>} : memref<1x132xf32, #tpu.memory_space<vmem>>, vector<1x16xf32>,
    %30 = vector.extract_strided_slice %25 {offsets = [2, 0], sizes = [1, 16], strides = [1, 1]} : vector<8x16xf32> to vector<1x16xf32>
    %c0_26 = arith.constant 0 : index
    %c32 = arith.constant 32 : index
    %31 = vector.load %arg9[%c0_26, %c32] : memref<1x132xf32, #tpu.memory_space<vmem>>, vector<1x16xf32>
    tpu.vector_store %arg9[%c0_26, %c32], %30 {strides = array<i32>} : memref<1x132xf32, #tpu.memory_space<vmem>>, vector<1x16xf32>,
    %32 = vector.extract_strided_slice %25 {offsets = [3, 0], sizes = [1, 16], strides = [1, 1]} : vector<8x16xf32> to vector<1x16xf32>
    %c0_27 = arith.constant 0 : index
    %c48 = arith.constant 48 : index
    %33 = vector.load %arg9[%c0_27, %c48] : memref<1x132xf32, #tpu.memory_space<vmem>>, vector<1x16xf32>
    tpu.vector_store %arg9[%c0_27, %c48], %32 {strides = array<i32>} : memref<1x132xf32, #tpu.memory_space<vmem>>, vector<1x16xf32>,
    %34 = vector.extract_strided_slice %25 {offsets = [4, 0], sizes = [1, 16], strides = [1, 1]} : vector<8x16xf32> to vector<1x16xf32>
    %c0_28 = arith.constant 0 : index
    %c64 = arith.constant 64 : index
    %35 = vector.load %arg9[%c0_28, %c64] : memref<1x132xf32, #tpu.memory_space<vmem>>, vector<1x16xf32>
    tpu.vector_store %arg9[%c0_28, %c64], %34 {strides = array<i32>} : memref<1x132xf32, #tpu.memory_space<vmem>>, vector<1x16xf32>,
    %36 = vector.extract_strided_slice %25 {offsets = [5, 0], sizes = [1, 16], strides = [1, 1]} : vector<8x16xf32> to vector<1x16xf32>
    %c0_29 = arith.constant 0 : index
    %c80 = arith.constant 80 : index
    %37 = vector.load %arg9[%c0_29, %c80] : memref<1x132xf32, #tpu.memory_space<vmem>>, vector<1x16xf32>
    tpu.vector_store %arg9[%c0_29, %c80], %36 {strides = array<i32>} : memref<1x132xf32, #tpu.memory_space<vmem>>, vector<1x16xf32>,
    %38 = vector.extract_strided_slice %25 {offsets = [6, 0], sizes = [1, 16], strides = [1, 1]} : vector<8x16xf32> to vector<1x16xf32>
    %c0_30 = arith.constant 0 : index
    %c96 = arith.constant 96 : index
    %39 = vector.load %arg9[%c0_30, %c96] : memref<1x132xf32, #tpu.memory_space<vmem>>, vector<1x16xf32>
    tpu.vector_store %arg9[%c0_30, %c96], %38 {strides = array<i32>} : memref<1x132xf32, #tpu.memory_space<vmem>>, vector<1x16xf32>,
    %40 = vector.extract_strided_slice %25 {offsets = [7, 0], sizes = [1, 16], strides = [1, 1]} : vector<8x16xf32> to vector<1x16xf32>
    %c0_31 = arith.constant 0 : index
    %c112 = arith.constant 112 : index
    %41 = vector.load %arg9[%c0_31, %c112] : memref<1x132xf32, #tpu.memory_space<vmem>>, vector<1x16xf32>
    tpu.vector_store %arg9[%c0_31, %c112], %40 {strides = array<i32>} : memref<1x132xf32, #tpu.memory_space<vmem>>, vector<1x16xf32>,
    %c0_32 = arith.constant 0 : index
    %c128 = arith.constant 128 : index
    %42 = vector.load %arg9[%c0_32, %c128] : memref<1x132xf32, #tpu.memory_space<vmem>>, vector<1x4xf32>
    tpu.vector_store %arg9[%c0_32, %c128], %9 {strides = array<i32>} : memref<1x132xf32, #tpu.memory_space<vmem>>, vector<1x4xf32>,
    %c0_33 = arith.constant 0 : index
    %c0_34 = arith.constant 0 : index
    %43 = vector.load %arg9[%c0_33, %c0_34] : memref<1x132xf32, #tpu.memory_space<vmem>>, vector<1x132xf32>
    %c48_35 = arith.constant 48 : index
    %c0_36 = arith.constant 0 : index
    %44 = vector.load %arg6[%c48_35, %c0_36] : memref<496x128xbf16, #tpu.memory_space<vmem>>, vector<132x128xbf16>
    %45 = arith.truncf %43 : vector<1x132xf32> to vector<1x132xbf16>
    %cst_37 = arith.constant dense<0.000000e+00> : vector<1x128xf32>
    %46 = tpu.matmul %45, %44, %cst_37 {dimension_numbers = #tpu.dot_dimension_numbers<[1], [0], [0], [1], [0, 0, 1, 1], [], []>} : vector<1x132xbf16>, vector<132x128xbf16>, vector<1x128xf32> -> vector<1x128xf32>
    %c0_38 = arith.constant 0 : index
    %c0_39 = arith.constant 0 : index
    %47 = vector.load %arg7[%c0_38, %c0_39] : memref<9x128xf32, #tpu.memory_space<vmem>>, vector<1x128xf32>
    %48 = arith.addf %46, %47 : vector<1x128xf32>
    %cst_40 = arith.constant 0.000000e+00 : f32
    %49 = vector.broadcast %cst_40 : f32 to vector<1x128xf32>
    %50 = arith.maximumf %48, %49 : vector<1x128xf32>
    %c192 = arith.constant 192 : index
    %c0_41 = arith.constant 0 : index
    %51 = vector.load %arg6[%c192, %c0_41] : memref<496x128xbf16, #tpu.memory_space<vmem>>, vector<128x16xbf16>
    %52 = arith.truncf %50 : vector<1x128xf32> to vector<1x128xbf16>
    %cst_42 = arith.constant dense<0.000000e+00> : vector<1x16xf32>
    %53 = tpu.matmul %52, %51, %cst_42 {dimension_numbers = #tpu.dot_dimension_numbers<[1], [0], [0], [1], [0, 0, 1, 1], [], []>} : vector<1x128xbf16>, vector<128x16xbf16>, vector<1x16xf32> -> vector<1x16xf32>
    %c1 = arith.constant 1 : index
    %c0_43 = arith.constant 0 : index
    %54 = vector.load %arg7[%c1, %c0_43] : memref<9x128xf32, #tpu.memory_space<vmem>>, vector<1x16xf32>
    %55 = arith.addf %53, %54 : vector<1x16xf32>
    %56 = vector.extract_strided_slice %55 {offsets = [0, 0], sizes = [1, 8], strides = [1, 1]} : vector<1x16xf32> to vector<1x8xf32>
    %c320 = arith.constant 320 : index
    %c0_44 = arith.constant 0 : index
    %57 = vector.load %arg6[%c320, %c0_44] : memref<496x128xbf16, #tpu.memory_space<vmem>>, vector<4x32xbf16>
    %58 = arith.truncf %5 : vector<1x4xf32> to vector<1x4xbf16>
    %cst_45 = arith.constant dense<0.000000e+00> : vector<1x32xf32>
    %59 = tpu.matmul %58, %57, %cst_45 {dimension_numbers = #tpu.dot_dimension_numbers<[1], [0], [0], [1], [0, 0, 1, 1], [], []>} : vector<1x4xbf16>, vector<4x32xbf16>, vector<1x32xf32> -> vector<1x32xf32>
    %c2 = arith.constant 2 : index
    %c0_46 = arith.constant 0 : index
    %60 = vector.load %arg7[%c2, %c0_46] : memref<9x128xf32, #tpu.memory_space<vmem>>, vector<1x32xf32>
    %61 = arith.addf %59, %60 : vector<1x32xf32>
    %cst_47 = arith.constant 0.000000e+00 : f32
    %62 = vector.broadcast %cst_47 : f32 to vector<1x32xf32>
    %63 = arith.maximumf %61, %62 : vector<1x32xf32>
    %c336 = arith.constant 336 : index
    %c0_48 = arith.constant 0 : index
    %64 = vector.load %arg6[%c336, %c0_48] : memref<496x128xbf16, #tpu.memory_space<vmem>>, vector<32x16xbf16>
    %65 = arith.truncf %63 : vector<1x32xf32> to vector<1x32xbf16>
    %cst_49 = arith.constant dense<0.000000e+00> : vector<1x16xf32>
    %66 = tpu.matmul %65, %64, %cst_49 {dimension_numbers = #tpu.dot_dimension_numbers<[1], [0], [0], [1], [0, 0, 1, 1], [], []>} : vector<1x32xbf16>, vector<32x16xbf16>, vector<1x16xf32> -> vector<1x16xf32>
    %c3 = arith.constant 3 : index
    %c0_50 = arith.constant 0 : index
    %67 = vector.load %arg7[%c3, %c0_50] : memref<9x128xf32, #tpu.memory_space<vmem>>, vector<1x16xf32>
    %68 = arith.addf %66, %67 : vector<1x16xf32>
    %cst_51 = arith.constant 0.000000e+00 : f32
    %69 = vector.broadcast %cst_51 : f32 to vector<1x16xf32>
    %70 = arith.maximumf %68, %69 : vector<1x16xf32>
    %c368 = arith.constant 368 : index
    %c0_52 = arith.constant 0 : index
    %71 = vector.load %arg6[%c368, %c0_52] : memref<496x128xbf16, #tpu.memory_space<vmem>>, vector<16x8xbf16>
    %72 = arith.truncf %70 : vector<1x16xf32> to vector<1x16xbf16>
    %cst_53 = arith.constant dense<0.000000e+00> : vector<1x8xf32>
    %73 = tpu.matmul %72, %71, %cst_53 {dimension_numbers = #tpu.dot_dimension_numbers<[1], [0], [0], [1], [0, 0, 1, 1], [], []>} : vector<1x16xbf16>, vector<16x8xbf16>, vector<1x8xf32> -> vector<1x8xf32>
    %c4 = arith.constant 4 : index
    %c0_54 = arith.constant 0 : index
    %74 = vector.load %arg7[%c4, %c0_54] : memref<9x128xf32, #tpu.memory_space<vmem>>, vector<1x8xf32>
    %75 = arith.addf %73, %74 : vector<1x8xf32>
    %c0_55 = arith.constant 0 : index
    %c0_56 = arith.constant 0 : index
    %76 = vector.load %arg10[%c0_55, %c0_56] : memref<1x28xf32, #tpu.memory_space<vmem>>, vector<1x8xf32>
    tpu.vector_store %arg10[%c0_55, %c0_56], %7 {strides = array<i32>} : memref<1x28xf32, #tpu.memory_space<vmem>>, vector<1x8xf32>,
    %c0_57 = arith.constant 0 : index
    %c8 = arith.constant 8 : index
    %77 = vector.load %arg10[%c0_57, %c8] : memref<1x28xf32, #tpu.memory_space<vmem>>, vector<1x4xf32>
    tpu.vector_store %arg10[%c0_57, %c8], %9 {strides = array<i32>} : memref<1x28xf32, #tpu.memory_space<vmem>>, vector<1x4xf32>,
    %c0_58 = arith.constant 0 : index
    %c12 = arith.constant 12 : index
    %78 = vector.load %arg10[%c0_58, %c12] : memref<1x28xf32, #tpu.memory_space<vmem>>, vector<1x8xf32>
    tpu.vector_store %arg10[%c0_58, %c12], %75 {strides = array<i32>} : memref<1x28xf32, #tpu.memory_space<vmem>>, vector<1x8xf32>,
    %c0_59 = arith.constant 0 : index
    %c20 = arith.constant 20 : index
    %79 = vector.load %arg10[%c0_59, %c20] : memref<1x28xf32, #tpu.memory_space<vmem>>, vector<1x8xf32>
    tpu.vector_store %arg10[%c0_59, %c20], %56 {strides = array<i32>} : memref<1x28xf32, #tpu.memory_space<vmem>>, vector<1x8xf32>,
    %c0_60 = arith.constant 0 : index
    %c0_61 = arith.constant 0 : index
    %80 = vector.load %arg10[%c0_60, %c0_61] : memref<1x28xf32, #tpu.memory_space<vmem>>, vector<1x28xf32>
    %c0_62 = arith.constant 0 : index
    %c0_63 = arith.constant 0 : index
    %81 = vector.load %arg10[%c0_62, %c0_63] : memref<1x28xf32, #tpu.memory_space<vmem>>, vector<1x20xf32>
    %c384 = arith.constant 384 : index
    %c0_64 = arith.constant 0 : index
    %82 = vector.load %arg6[%c384, %c0_64] : memref<496x128xbf16, #tpu.memory_space<vmem>>, vector<28x40xbf16>
    %83 = arith.truncf %80 : vector<1x28xf32> to vector<1x28xbf16>
    %cst_65 = arith.constant dense<0.000000e+00> : vector<1x40xf32>
    %84 = tpu.matmul %83, %82, %cst_65 {dimension_numbers = #tpu.dot_dimension_numbers<[1], [0], [0], [1], [0, 0, 1, 1], [], []>} : vector<1x28xbf16>, vector<28x40xbf16>, vector<1x40xf32> -> vector<1x40xf32>
    %c5 = arith.constant 5 : index
    %c0_66 = arith.constant 0 : index
    %85 = vector.load %arg7[%c5, %c0_66] : memref<9x128xf32, #tpu.memory_space<vmem>>, vector<1x40xf32>
    %86 = arith.addf %84, %85 : vector<1x40xf32>
    %87 = arith.negf %86 : vector<1x40xf32>
    %88 = math.exp %87 : vector<1x40xf32>
    %cst_67 = arith.constant 1.000000e+00 : f32
    %89 = vector.broadcast %cst_67 : f32 to vector<1x40xf32>
    %90 = arith.addf %89, %88 : vector<1x40xf32>
    %91 = arith.divf %89, %90 : vector<1x40xf32>
    %c416 = arith.constant 416 : index
    %c0_68 = arith.constant 0 : index
    %92 = vector.load %arg6[%c416, %c0_68] : memref<496x128xbf16, #tpu.memory_space<vmem>>, vector<20x16xbf16>
    %93 = arith.truncf %81 : vector<1x20xf32> to vector<1x20xbf16>
    %cst_69 = arith.constant dense<0.000000e+00> : vector<1x16xf32>
    %94 = tpu.matmul %93, %92, %cst_69 {dimension_numbers = #tpu.dot_dimension_numbers<[1], [0], [0], [1], [0, 0, 1, 1], [], []>} : vector<1x20xbf16>, vector<20x16xbf16>, vector<1x16xf32> -> vector<1x16xf32>
    %c6 = arith.constant 6 : index
    %c0_70 = arith.constant 0 : index
    %95 = vector.load %arg7[%c6, %c0_70] : memref<9x128xf32, #tpu.memory_space<vmem>>, vector<1x16xf32>
    %96 = arith.addf %94, %95 : vector<1x16xf32>
    %cst_71 = arith.constant 0.000000e+00 : f32
    %97 = vector.broadcast %cst_71 : f32 to vector<1x16xf32>
    %98 = arith.maximumf %96, %97 : vector<1x16xf32>
    %c448 = arith.constant 448 : index
    %c0_72 = arith.constant 0 : index
    %99 = vector.load %arg6[%c448, %c0_72] : memref<496x128xbf16, #tpu.memory_space<vmem>>, vector<16x32xbf16>
    %100 = arith.truncf %98 : vector<1x16xf32> to vector<1x16xbf16>
    %cst_73 = arith.constant dense<0.000000e+00> : vector<1x32xf32>
    %101 = tpu.matmul %100, %99, %cst_73 {dimension_numbers = #tpu.dot_dimension_numbers<[1], [0], [0], [1], [0, 0, 1, 1], [], []>} : vector<1x16xbf16>, vector<16x32xbf16>, vector<1x32xf32> -> vector<1x32xf32>
    %c7 = arith.constant 7 : index
    %c0_74 = arith.constant 0 : index
    %102 = vector.load %arg7[%c7, %c0_74] : memref<9x128xf32, #tpu.memory_space<vmem>>, vector<1x32xf32>
    %103 = arith.addf %101, %102 : vector<1x32xf32>
    %cst_75 = arith.constant 0.000000e+00 : f32
    %104 = vector.broadcast %cst_75 : f32 to vector<1x32xf32>
    %105 = arith.maximumf %103, %104 : vector<1x32xf32>
    %c464 = arith.constant 464 : index
    %c0_76 = arith.constant 0 : index
    %106 = vector.load %arg6[%c464, %c0_76] : memref<496x128xbf16, #tpu.memory_space<vmem>>, vector<32x4xbf16>
    %107 = arith.truncf %105 : vector<1x32xf32> to vector<1x32xbf16>
    %cst_77 = arith.constant dense<0.000000e+00> : vector<1x4xf32>
    %108 = tpu.matmul %107, %106, %cst_77 {dimension_numbers = #tpu.dot_dimension_numbers<[1], [0], [0], [1], [0, 0, 1, 1], [], []>} : vector<1x32xbf16>, vector<32x4xbf16>, vector<1x4xf32> -> vector<1x4xf32>
    %c8_78 = arith.constant 8 : index
    %c0_79 = arith.constant 0 : index
    %109 = vector.load %arg7[%c8_78, %c0_79] : memref<9x128xf32, #tpu.memory_space<vmem>>, vector<1x4xf32>
    %110 = arith.addf %108, %109 : vector<1x4xf32>
    %111 = arith.negf %110 : vector<1x4xf32>
    %112 = math.exp %111 : vector<1x4xf32>
    %cst_80 = arith.constant 1.000000e+00 : f32
    %113 = vector.broadcast %cst_80 : f32 to vector<1x4xf32>
    %114 = arith.addf %113, %112 : vector<1x4xf32>
    %115 = arith.divf %113, %114 : vector<1x4xf32>
    %c0_81 = arith.constant 0 : index
    %c0_82 = arith.constant 0 : index
    %c0_83 = arith.constant 0 : index
    %116 = vector.load %arg8[%c0_81, %c0_82, %c0_83] : memref<1x1x60xf32, #tpu.memory_space<vmem>>, vector<1x1x40xf32>
    %117 = vector.shape_cast %116 : vector<1x1x40xf32> to vector<1x40xf32>
    %118 = vector.shape_cast %91 : vector<1x40xf32> to vector<1x1x40xf32>
    tpu.vector_store %arg8[%c0_81, %c0_82, %c0_83], %118 {strides = array<i32>} : memref<1x1x60xf32, #tpu.memory_space<vmem>>, vector<1x1x40xf32>,
    %c0_84 = arith.constant 0 : index
    %c0_85 = arith.constant 0 : index
    %c40 = arith.constant 40 : index
    %119 = vector.load %arg8[%c0_84, %c0_85, %c40] : memref<1x1x60xf32, #tpu.memory_space<vmem>>, vector<1x1x4xf32>
    %120 = vector.shape_cast %119 : vector<1x1x4xf32> to vector<1x4xf32>
    %121 = vector.shape_cast %115 : vector<1x4xf32> to vector<1x1x4xf32>
    tpu.vector_store %arg8[%c0_84, %c0_85, %c40], %121 {strides = array<i32>} : memref<1x1x60xf32, #tpu.memory_space<vmem>>, vector<1x1x4xf32>,
    %c0_86 = arith.constant 0 : index
    %c0_87 = arith.constant 0 : index
    %c44 = arith.constant 44 : index
    %122 = vector.load %arg8[%c0_86, %c0_87, %c44] : memref<1x1x60xf32, #tpu.memory_space<vmem>>, vector<1x1x16xf32>
    %123 = vector.shape_cast %122 : vector<1x1x16xf32> to vector<1x16xf32>
    %124 = vector.shape_cast %55 : vector<1x16xf32> to vector<1x1x16xf32>
    tpu.vector_store %arg8[%c0_86, %c0_87, %c44], %124 {strides = array<i32>} : memref<1x1x60xf32, #tpu.memory_space<vmem>>, vector<1x1x16xf32>,
    return
  }
  func.func @transform_0(%arg0: i32) -> (i32, i32, i32) {
    %c0_i32 = arith.constant 0 : i32
    %c0_i32_0 = arith.constant 0 : i32
    %c0_i32_1 = arith.constant 0 : i32
    return %arg0, %c0_i32, %c0_i32_0 : i32, i32, i32
  }
  func.func @transform_1(%arg0: i32) -> (i32, i32, i32) {
    %c0_i32 = arith.constant 0 : i32
    %c0_i32_0 = arith.constant 0 : i32
    %c0_i32_1 = arith.constant 0 : i32
    return %arg0, %c0_i32, %c0_i32_0 : i32, i32, i32
  }
  func.func @transform_2(%arg0: i32) -> (i32, i32, i32) {
    %c0_i32 = arith.constant 0 : i32
    %c0_i32_0 = arith.constant 0 : i32
    %c0_i32_1 = arith.constant 0 : i32
    return %arg0, %c0_i32, %c0_i32_0 : i32, i32, i32
  }
  func.func @transform_3(%arg0: i32) -> (i32, i32, i32) {
    %c0_i32 = arith.constant 0 : i32
    %c0_i32_0 = arith.constant 0 : i32
    %c0_i32_1 = arith.constant 0 : i32
    return %arg0, %c0_i32, %c0_i32_0 : i32, i32, i32
  }
  func.func @transform_4(%arg0: i32) -> (i32, i32, i32) {
    %c0_i32 = arith.constant 0 : i32
    %c0_i32_0 = arith.constant 0 : i32
    %c0_i32_1 = arith.constant 0 : i32
    return %arg0, %c0_i32, %c0_i32_0 : i32, i32, i32
  }
  func.func @transform_5(%arg0: i32) -> (i32, i32) {
    %c0_i32 = arith.constant 0 : i32
    %c0_i32_0 = arith.constant 0 : i32
    %c0_i32_1 = arith.constant 0 : i32
    return %c0_i32, %c0_i32_0 : i32, i32
  }
  func.func @transform_6(%arg0: i32) -> (i32, i32) {
    %c0_i32 = arith.constant 0 : i32
    %c0_i32_0 = arith.constant 0 : i32
    %c0_i32_1 = arith.constant 0 : i32
    return %c0_i32, %c0_i32_0 : i32, i32
  }
  func.func @transform_7(%arg0: i32) -> (i32, i32, i32) {
    %c0_i32 = arith.constant 0 : i32
    %c0_i32_0 = arith.constant 0 : i32
    %c0_i32_1 = arith.constant 0 : i32
    return %arg0, %c0_i32, %c0_i32_0 : i32, i32, i32
  }
}

</mosaic_0001>

<llo_original>
// kernel: tpu_custom_call.1
$region0: #{tpu_custom_call.1}
  #allocation0 [shape = 'u32[]', space=smem, size = 0x4, offset = 0x4, fixed_abs, tag = 'smem constant byte address 0x4 - core index']
  #allocation1 [shape = 'u32[144,128]{1,0:T(1,128)}', space=vmem, size = 0x12000, scoped, tag = 'internal scratch']
  #allocation2 [shape = 'f32[1,132]{1,0:T(1,128)}', space=vmem, size = 0x400, scoped, tag = 'scratch operand']
  #allocation3 [shape = 'f32[1,28]{1,0:T(1,128)}', space=vmem, size = 0x200, scoped, tag = 'scratch operand']
  %s0 = inlined_call_operand.vmem [shape: f32[2,8,8], index: 0, kind: input, shape index: {}]
  %s1 = inlined_call_operand.vmem [shape: f32[2,8,4], index: 1, kind: input, shape index: {}]
  %s2 = inlined_call_operand.vmem [shape: f32[2,1,4], index: 2, kind: input, shape index: {}]
  %s3 = inlined_call_operand.hbm [shape: f32[2,1,8], index: 3, kind: input, shape index: {}]
  %s4 = inlined_call_operand.vmem [shape: f32[2,1,4], index: 4, kind: input, shape index: {}]
  %s5 = inlined_call_operand.hbm [shape: bf16[496,128], index: 5, kind: input, shape index: {}]
  %s6 = inlined_call_operand.vmem [shape: f32[9,128], index: 6, kind: input, shape index: {}]
  %s7 = inlined_call_operand.hbm [shape: f32[2,1,60], index: 7, kind: output, shape index: {}]
  %s8 = sld [smem:[#allocation0]]
  $region69: #{tpu_custom_call.1} parent=0
    _
  %s10 = ssub.s32 1, %s8
  %s11 = scalar_select 0, %s10, %s8
  $region1: #{tpu_custom_call.1} parent=0
    #allocation4 [shape = 'u8[1024]{0}', space=vmem, size = 0x400, scoped, tag = 'input window, operand 3']
    #allocation5 [shape = 's32[2]{0}', space=sflag, size = 0x8, scoped, tag = 'scoped memory for tpu_custom_call.1']
    #allocation6 [shape = 's32[2]{0}', space=sflag, size = 0x8, scoped, tag = 'scoped memory for tpu_custom_call.1']
    #allocation7 [shape = 'u8[126976]{0}', space=vmem, size = 0x1f000, scoped, tag = 'input window, operand 5, single buffered']
    #allocation8 [shape = 's32[1]{0}', space=sflag, size = 0x4, scoped, tag = 'scoped memory for tpu_custom_call.1']
    #allocation9 [shape = 'u8[1024]{0}', space=vmem, size = 0x400, scoped, tag = 'output window, operand 0']
    %12 = vsyncpa [#allocation5], 0
    %s13 = scalar_lea.sflag [#allocation5], 1
    %14 = vsyncpa %s13, 0
    %15 = vsyncpa [#allocation8], 0
    %16 = vsyncpa [#allocation6], 0
    %s17 = scalar_lea.sflag [#allocation6], 1
    %18 = vsyncpa %s17, 0
    loop: start=0, step=1, limit=4
    $region2: #{tpu_custom_call.1} parent=1 // loop_pre_header
      _
    $region3: #{tpu_custom_call.1} parent=1 // loop_header
      %s20 = sphi 0, %s24
      %p21 = scmp.ge.s32.totalorder %s20, 4
      %s30 = sphi 0, %s32
      %s33 = sphi 0, %s30
      %s34 = sphi 0, %s33
      %s50 = sphi 0, %s34
      %s56 = sphi 0, %s58
      %s59 = sphi 0, %s56
      %s60 = sphi 0, %s59
      %s76 = sphi 0, %s60
      %s82 = sphi 0, %s84
      %s85 = sphi 0, %s82
      %s86 = sphi 0, %s85
      %s102 = sphi 0, %s86
      %s108 = sphi 0, %s110
      %s111 = sphi 0, %s108
      %s112 = sphi 0, %s111
      %s128 = sphi 0, %s112
      %s134 = sphi 0, %s136
      %s137 = sphi 0, %s134
      %s138 = sphi 0, %s137
      %s154 = sphi 0, %s138
      %s158 = sphi 0, %s158
      %s160 = sphi 0, %s158
      %s161 = sphi 0, %s160
      %s175 = sphi 0, %s161
      %s179 = sphi 0, %s179
      %s181 = sphi 0, %s179
      %s182 = sphi 0, %s181
      %s196 = sphi 0, %s182
      %s202 = sphi 0, %s204
      %s205 = sphi 0, %s202
      %s206 = sphi 0, %s205
      %s222 = sphi 0, %s206
    $region4: #{tpu_custom_call.1} parent=1 // loop_header_branch
      %23 = sbr.rel (%p21) target = $region8
    $region5: #{tpu_custom_call.1} parent=1 // loop_body
      %s25 = ssub.s32 %s20, 1
      %s26 = ssub.s32 %s20, 2
      %s27 = sadd.s32 %s20, 1
      %s28 = ssub.s32 %s20, %s27
      %p29 = scmp.eq.s32.totalorder %s28, 0
      %s31 = sadd.s32 %s30, 1
      %s32 = scalar_select %p29, %s30, %s31
      %p35 = pneg %p29
      %p36 = scmp.eq.s32.totalorder %s20, 1
      %p37 = por %p35, %p36
      %p38 = scmp.ne.s32.totalorder %s30, %s33
      %p39 = scmp.eq.s32.totalorder %s20, 0
      %p40 = por %p38, %p39
      %p41 = scmp.ne.s32.totalorder %s30, %s33
      %p42 = scmp.eq.s32.totalorder %s25, 1
      %p43 = por %p41, %p42
      %p44 = scmp.ne.s32.totalorder %s33, %s34
      %p45 = scmp.eq.s32.totalorder %s25, 0
      %p46 = por %p44, %p45
      %p47 = scmp.ne.s32.totalorder %s33, %s34
      %p48 = scmp.eq.s32.totalorder %s26, 1
      %p49 = por %p47, %p48
      %p51 = scmp.ne.s32.totalorder %s34, %s50
      %p52 = scmp.eq.s32.totalorder %s26, 0
      %p53 = por %p51, %p52
      %s54 = ssub.s32 %s20, %s27
      %p55 = scmp.eq.s32.totalorder %s54, 0
      %s57 = sadd.s32 %s56, 1
      %s58 = scalar_select %p55, %s56, %s57
      %p61 = pneg %p55
      %p62 = scmp.eq.s32.totalorder %s20, 1
      %p63 = por %p61, %p62
      %p64 = scmp.ne.s32.totalorder %s56, %s59
      %p65 = scmp.eq.s32.totalorder %s20, 0
      %p66 = por %p64, %p65
      %p67 = scmp.ne.s32.totalorder %s56, %s59
      %p68 = scmp.eq.s32.totalorder %s25, 1
      %p69 = por %p67, %p68
      %p70 = scmp.ne.s32.totalorder %s59, %s60
      %p71 = scmp.eq.s32.totalorder %s25, 0
      %p72 = por %p70, %p71
      %p73 = scmp.ne.s32.totalorder %s59, %s60
      %p74 = scmp.eq.s32.totalorder %s26, 1
      %p75 = por %p73, %p74
      %p77 = scmp.ne.s32.totalorder %s60, %s76
      %p78 = scmp.eq.s32.totalorder %s26, 0
      %p79 = por %p77, %p78
      %s80 = ssub.s32 %s20, %s27
      %p81 = scmp.eq.s32.totalorder %s80, 0
      %s83 = sadd.s32 %s82, 1
      %s84 = scalar_select %p81, %s82, %s83
      %p87 = pneg %p81
      %p88 = scmp.eq.s32.totalorder %s20, 1
      %p89 = por %p87, %p88
      %p90 = scmp.ne.s32.totalorder %s82, %s85
      %p91 = scmp.eq.s32.totalorder %s20, 0
      %p92 = por %p90, %p91
      %p93 = scmp.ne.s32.totalorder %s82, %s85
      %p94 = scmp.eq.s32.totalorder %s25, 1
      %p95 = por %p93, %p94
      %p96 = scmp.ne.s32.totalorder %s85, %s86
      %p97 = scmp.eq.s32.totalorder %s25, 0
      %p98 = por %p96, %p97
      %p99 = scmp.ne.s32.totalorder %s85, %s86
      %p100 = scmp.eq.s32.totalorder %s26, 1
      %p101 = por %p99, %p100
      %p103 = scmp.ne.s32.totalorder %s86, %s102
      %p104 = scmp.eq.s32.totalorder %s26, 0
      %p105 = por %p103, %p104
      %s106 = ssub.s32 %s20, %s27
      %p107 = scmp.eq.s32.totalorder %s106, 0
      %s109 = sadd.s32 %s108, 1
      %s110 = scalar_select %p107, %s108, %s109
      %p113 = pneg %p107
      %p114 = scmp.eq.s32.totalorder %s20, 1
      %p115 = por %p113, %p114
      %p116 = scmp.ne.s32.totalorder %s108, %s111
      %p117 = scmp.eq.s32.totalorder %s20, 0
      %p118 = por %p116, %p117
      %p119 = scmp.ne.s32.totalorder %s108, %s111
      %p120 = scmp.eq.s32.totalorder %s25, 1
      %p121 = por %p119, %p120
      %p122 = scmp.ne.s32.totalorder %s111, %s112
      %p123 = scmp.eq.s32.totalorder %s25, 0
      %p124 = por %p122, %p123
      %p125 = scmp.ne.s32.totalorder %s111, %s112
      %p126 = scmp.eq.s32.totalorder %s26, 1
      %p127 = por %p125, %p126
      %p129 = scmp.ne.s32.totalorder %s112, %s128
      %p130 = scmp.eq.s32.totalorder %s26, 0
      %p131 = por %p129, %p130
      %s132 = ssub.s32 %s20, %s27
      %p133 = scmp.eq.s32.totalorder %s132, 0
      %s135 = sadd.s32 %s134, 1
      %s136 = scalar_select %p133, %s134, %s135
      %p139 = pneg %p133
      %p140 = scmp.eq.s32.totalorder %s20, 1
      %p141 = por %p139, %p140
      %p142 = scmp.ne.s32.totalorder %s134, %s137
      %p143 = scmp.eq.s32.totalorder %s20, 0
      %p144 = por %p142, %p143
      %p145 = scmp.ne.s32.totalorder %s134, %s137
      %p146 = scmp.eq.s32.totalorder %s25, 1
      %p147 = por %p145, %p146
      %p148 = scmp.ne.s32.totalorder %s137, %s138
      %p149 = scmp.eq.s32.totalorder %s25, 0
      %p150 = por %p148, %p149
      %p151 = scmp.ne.s32.totalorder %s137, %s138
      %p152 = scmp.eq.s32.totalorder %s26, 1
      %p153 = por %p151, %p152
      %p155 = scmp.ne.s32.totalorder %s138, %s154
      %p156 = scmp.eq.s32.totalorder %s26, 0
      %p157 = por %p155, %p156
      %s159 = sadd.s32 %s158, 1
      %p162 = scmp.eq.s32.totalorder %s20, 1
      %p163 = scmp.ne.s32.totalorder %s158, %s160
      %p164 = scmp.eq.s32.totalorder %s20, 0
      %p165 = por %p163, %p164
      %p166 = scmp.ne.s32.totalorder %s158, %s160
      %p167 = scmp.eq.s32.totalorder %s25, 1
      %p168 = por %p166, %p167
      %p169 = scmp.ne.s32.totalorder %s160, %s161
      %p170 = scmp.eq.s32.totalorder %s25, 0
      %p171 = por %p169, %p170
      %p172 = scmp.ne.s32.totalorder %s160, %s161
      %p173 = scmp.eq.s32.totalorder %s26, 1
      %p174 = por %p172, %p173
      %p176 = scmp.ne.s32.totalorder %s161, %s175
      %p177 = scmp.eq.s32.totalorder %s26, 0
      %p178 = por %p176, %p177
      %s180 = sadd.s32 %s179, 1
      %p183 = scmp.eq.s32.totalorder %s20, 1
      %p184 = scmp.ne.s32.totalorder %s179, %s181
      %p185 = scmp.eq.s32.totalorder %s20, 0
      %p186 = por %p184, %p185
      %p187 = scmp.ne.s32.totalorder %s179, %s181
      %p188 = scmp.eq.s32.totalorder %s25, 1
      %p189 = por %p187, %p188
      %p190 = scmp.ne.s32.totalorder %s181, %s182
      %p191 = scmp.eq.s32.totalorder %s25, 0
      %p192 = por %p190, %p191
      %p193 = scmp.ne.s32.totalorder %s181, %s182
      %p194 = scmp.eq.s32.totalorder %s26, 1
      %p195 = por %p193, %p194
      %p197 = scmp.ne.s32.totalorder %s182, %s196
      %p198 = scmp.eq.s32.totalorder %s26, 0
      %p199 = por %p197, %p198
      %s200 = ssub.s32 %s20, %s27
      %p201 = scmp.eq.s32.totalorder %s200, 0
      %s203 = sadd.s32 %s202, 1
      %s204 = scalar_select %p201, %s202, %s203
      %p207 = pneg %p201
      %p208 = scmp.eq.s32.totalorder %s20, 1
      %p209 = por %p207, %p208
      %p210 = scmp.ne.s32.totalorder %s202, %s205
      %p211 = scmp.eq.s32.totalorder %s20, 0
      %p212 = por %p210, %p211
      %p213 = scmp.ne.s32.totalorder %s202, %s205
      %p214 = scmp.eq.s32.totalorder %s25, 1
      %p215 = por %p213, %p214
      %p216 = scmp.ne.s32.totalorder %s205, %s206
      %p217 = scmp.eq.s32.totalorder %s25, 0
      %p218 = por %p216, %p217
      %p219 = scmp.ne.s32.totalorder %s205, %s206
      %p220 = scmp.eq.s32.totalorder %s26, 1
      %p221 = por %p219, %p220
      %p223 = scmp.ne.s32.totalorder %s206, %s222
      %p224 = scmp.eq.s32.totalorder %s26, 0
      %p225 = por %p223, %p224
      %p226 = scmp.le.s32.totalorder 1, %s20
      %p227 = scmp.lt.s32.totalorder %s20, 3
      %p228 = pnand %p226, %p227
      %p229 = pneg %p228
      // Predicated region
      $region9: #{tpu_custom_call.1} parent=5 // pred_check
        _
      $region10: #{tpu_custom_call.1} parent=5 // pred_check_branch
        %231 = sbr.rel (%p228) target = $region12
      $region11: #{tpu_custom_call.1} parent=5 // pred_region
        %s232 = ssub.s32 %s20, 1
        // Predicated region
        $region13: #{tpu_custom_call.1} parent=11 // pred_check
          %p233 = pneg %p171
        $region14: #{tpu_custom_call.1} parent=11 // pred_check_branch
          %235 = sbr.rel (%p233) target = $region16
        $region15: #{tpu_custom_call.1} parent=11 // pred_region
          %s237 = ssub.s32 3968, 3968
          %238 = vsyncadd [#allocation8], %s237
          %s239 = sshll.u32 [#allocation7], 4
          %s240 = int_to_ptr.vmem [resolvable:$true] %s239
          %245 = dma.hbm_to_vmem [thread:$0]  %s5, 3968, %s240, [#allocation8], 64, 64, 4
        $region16: #{tpu_custom_call.1} parent=11 // pred_fallthru
          _
        // Predicated region
        $region17: #{tpu_custom_call.1} parent=11 // pred_check
          %p246 = pneg %p192
        $region18: #{tpu_custom_call.1} parent=11 // pred_check_branch
          %248 = sbr.rel (%p246) target = $region20
        $region19: #{tpu_custom_call.1} parent=11 // pred_region
          _
        $region20: #{tpu_custom_call.1} parent=11 // pred_fallthru
          _
      $region12: #{tpu_custom_call.1} parent=5 // pred_fallthru
        _
      %p249 = scmp.lt.s32.totalorder %s20, 2
      // Predicated region
      $region21: #{tpu_custom_call.1} parent=5 // pred_check
        %p250 = pneg %p249
      $region22: #{tpu_custom_call.1} parent=5 // pred_check_branch
        %252 = sbr.rel (%p250) target = $region24
      $region23: #{tpu_custom_call.1} parent=5 // pred_region
        // Predicated region
        $region25: #{tpu_custom_call.1} parent=23 // pred_check
          %p253 = pneg %p40
        $region26: #{tpu_custom_call.1} parent=23 // pred_check_branch
          %255 = sbr.rel (%p253) target = $region28
        $region27: #{tpu_custom_call.1} parent=23 // pred_region
          %p256 = scmp.lt.s32.totalorder %s20, 1
          %s257 = scalar_select %p256, %s20, 1
          %s258 = smul.addr %s257, 8
          %s259 = scalar_lea.vmem %s0, %s258
        $region28: #{tpu_custom_call.1} parent=23 // pred_fallthru
          _
        // Predicated region
        $region29: #{tpu_custom_call.1} parent=23 // pred_check
          %p260 = pneg %p66
        $region30: #{tpu_custom_call.1} parent=23 // pred_check_branch
          %262 = sbr.rel (%p260) target = $region32
        $region31: #{tpu_custom_call.1} parent=23 // pred_region
          %p263 = scmp.lt.s32.totalorder %s20, 1
          %s264 = scalar_select %p263, %s20, 1
          %s265 = smul.addr %s264, 8
          %s266 = scalar_lea.vmem %s1, %s265
        $region32: #{tpu_custom_call.1} parent=23 // pred_fallthru
          _
        // Predicated region
        $region33: #{tpu_custom_call.1} parent=23 // pred_check
          %p267 = pneg %p92
        $region34: #{tpu_custom_call.1} parent=23 // pred_check_branch
          %269 = sbr.rel (%p267) target = $region36
        $region35: #{tpu_custom_call.1} parent=23 // pred_region
          %p270 = scmp.lt.s32.totalorder %s20, 1
          %s271 = scalar_select %p270, %s20, 1
          %s272 = scalar_lea.vmem %s2, %s271
        $region36: #{tpu_custom_call.1} parent=23 // pred_fallthru
          _
        // Predicated region
        $region37: #{tpu_custom_call.1} parent=23 // pred_check
          %p273 = pneg %p118
        $region38: #{tpu_custom_call.1} parent=23 // pred_check_branch
          %275 = sbr.rel (%p273) target = $region40
        $region39: #{tpu_custom_call.1} parent=23 // pred_region
          %s276 = sand.u32 %s108, 1
          %s277 = scalar_lea.sflag [#allocation5], %s276
          %s278 = sand.u32 %s108, 1
          %s279 = scalar_lea.vmem [#allocation4], %s278
          %s281 = ssub.s32 16, 16
          %282 = vsyncadd %s277, %s281
          %s283 = smul.addr %s20, 16
          %s284 = scalar_lea.hbm %s3, %s283
          %s286 = sshll.u32 %s279, 4
          %s287 = int_to_ptr.vmem [resolvable:$true] %s286
          %289 = dma.hbm_to_vmem [thread:$0]  %s284, 16, %s287, %s277
        $region40: #{tpu_custom_call.1} parent=23 // pred_fallthru
          _
        // Predicated region
        $region41: #{tpu_custom_call.1} parent=23 // pred_check
          %p290 = pneg %p144
        $region42: #{tpu_custom_call.1} parent=23 // pred_check_branch
          %292 = sbr.rel (%p290) target = $region44
        $region43: #{tpu_custom_call.1} parent=23 // pred_region
          %p293 = scmp.lt.s32.totalorder %s20, 1
          %s294 = scalar_select %p293, %s20, 1
          %s295 = scalar_lea.vmem %s4, %s294
        $region44: #{tpu_custom_call.1} parent=23 // pred_fallthru
          _
      $region24: #{tpu_custom_call.1} parent=5 // pred_fallthru
        _
      %p296 = scmp.le.s32.totalorder 1, %s20
      %p297 = scmp.lt.s32.totalorder %s20, 3
      %p298 = pnand %p296, %p297
      %p299 = pneg %p298
      // Predicated region
      $region45: #{tpu_custom_call.1} parent=5 // pred_check
        _
      $region46: #{tpu_custom_call.1} parent=5 // pred_check_branch
        %301 = sbr.rel (%p298) target = $region48
      $region47: #{tpu_custom_call.1} parent=5 // pred_region
        %s302 = ssub.s32 %s20, 1
        %s303 = sand.u32 %s111, 1
        %s304 = scalar_lea.sflag [#allocation5], %s303
        %s305 = sand.u32 %s111, 1
        %s306 = scalar_lea.vmem [#allocation4], %s305
        // Predicated region
        $region49: #{tpu_custom_call.1} parent=47 // pred_check
          %p307 = pneg %p124
        $region50: #{tpu_custom_call.1} parent=47 // pred_check_branch
          %309 = sbr.rel (%p307) target = $region52
        $region51: #{tpu_custom_call.1} parent=47 // pred_region
          %310 = dma.done %s304, 16
        $region52: #{tpu_custom_call.1} parent=47 // pred_fallthru
          _
        // Predicated region
        $region53: #{tpu_custom_call.1} parent=47 // pred_check
          %p311 = pneg %p171
        $region54: #{tpu_custom_call.1} parent=47 // pred_check_branch
          %313 = sbr.rel (%p311) target = $region56
        $region55: #{tpu_custom_call.1} parent=47 // pred_region
          %314 = dma.done [#allocation8], 3968
        $region56: #{tpu_custom_call.1} parent=47 // pred_fallthru
          _
        %p315 = scmp.lt.s32.totalorder %s25, 1
        %s316 = scalar_select %p315, %s25, 1
        %s317 = smul.addr %s316, 8
        %s318 = scalar_lea.vmem %s0, %s317
        %p319 = pneg %p46
        %p320 = pneg %p43
        %p321 = scmp.lt.s32.totalorder %s25, 1
        %s322 = scalar_select %p321, %s25, 1
        %s323 = smul.addr %s322, 8
        %s324 = scalar_lea.vmem %s1, %s323
        %p325 = pneg %p72
        %p326 = pneg %p69
        %p327 = scmp.lt.s32.totalorder %s25, 1
        %s328 = scalar_select %p327, %s25, 1
        %s329 = scalar_lea.vmem %s2, %s328
        %p330 = pneg %p98
        %p331 = pneg %p95
        %s332 = sand.u32 %s111, 1
        %s333 = scalar_lea.sflag [#allocation5], %s332
        %s334 = sand.u32 %s111, 1
        %s335 = scalar_lea.vmem [#allocation4], %s334
        %p336 = pneg %p124
        %p337 = pneg %p121
        %p338 = scmp.lt.s32.totalorder %s25, 1
        %s339 = scalar_select %p338, %s25, 1
        %s340 = scalar_lea.vmem %s4, %s339
        %p341 = pneg %p150
        %p342 = pneg %p147
        %p343 = pneg %p171
        %p344 = pneg %p168
        %p345 = pneg %p192
        %p346 = pneg %p189
        %p347 = pneg %p218
        %p348 = pneg %p215
        %s349 = sand.u32 %s205, 1
        %s350 = scalar_lea.sflag [#allocation6], %s349
        %s351 = sand.u32 %s205, 1
        %s352 = scalar_lea.vmem [#allocation9], %s351
        %p353 = scmp.lt.s32.totalorder %s25, 1
        %s354 = scalar_select %p353, %s25, 1
        %s355 = smul.addr %s354, 8
        %s356 = scalar_lea.vmem %s0, %s355
        %p357 = scmp.lt.s32.totalorder %s25, 1
        %s358 = scalar_select %p357, %s25, 1
        %s359 = smul.addr %s358, 8
        %s360 = scalar_lea.vmem %s1, %s359
        %p361 = scmp.lt.s32.totalorder %s25, 1
        %s362 = scalar_select %p361, %s25, 1
        %s363 = scalar_lea.vmem %s2, %s362
        %p364 = scmp.lt.s32.totalorder %s25, 1
        %s365 = scalar_select %p364, %s25, 1
        %s366 = scalar_lea.vmem %s4, %s365
        %v368 = vld [vmem:[%s356] sm:$0xff]
        %v369 = vld [vmem:[%s360] sm:$0xff]
        %v370 = vld [vmem:[%s363] sm:$0x1]
        %v371 = vld [vmem:[%s306] sm:$0x1]
        %v372 = vld [vmem:[%s366] sm:$0x1]
        %v373 = vpack.c.bf16 %v368, %v368
        %v374 = vpack.c.bf16 %v369, %v369
        %vm375 = vcmask 64512
        %v377 = vsel %vm375, %v373, 0
        %vm379 = vcmask 1043456
        %v381 = vsel %vm379, %v374, 0
        %383 = vmatprep.subr.bf16.mxu0 0
        %384 = vmatpush1.bf16.msra.mxu0 %v381
        %385 = vmatprep.subr.bf16.mxu0 0
        %386 = vmatpush1.bf16.msra.mxu0 0
        %387 = vmatprep.subr.bf16.mxu0 0
        %388 = vmatpush1.bf16.msra.mxu0 0
        %389 = vmatprep.subr.bf16.mxu0 0
        %390 = vmatpush1.bf16.msra.mxu0 0
        %391 = vmatprep.subr.bf16.mxu0 0
        %392 = vmatpush1.bf16.msra.mxu0 0
        %393 = vmatprep.subr.bf16.mxu0 0
        %394 = vmatpush1.bf16.msra.mxu0 0
        %395 = vmatprep.subr.bf16.mxu0 0
        %396 = vmatpush1.bf16.msra.mxu0 0
        %397 = vmatprep.subr.bf16.mxu0 0
        %398 = vmatpush1.bf16.msra.mxu0 0
        %399 = vmatprep.subr.bf16.mxu0 0
        %400 = vmatpush1.bf16.msra.mxu0 0
        %401 = vmatprep.subr.bf16.mxu0 0
        %402 = vmatpush1.bf16.msra.mxu0 0
        %403 = vmatprep.subr.bf16.mxu0 0
        %404 = vmatpush1.bf16.msra.mxu0 0
        %405 = vmatprep.subr.bf16.mxu0 0
        %406 = vmatpush1.bf16.msra.mxu0 0
        %407 = vmatprep.subr.bf16.mxu0 0
        %408 = vmatpush1.bf16.msra.mxu0 0
        %409 = vmatprep.subr.bf16.mxu0 0
        %410 = vmatpush1.bf16.msra.mxu0 0
        %411 = vmatprep.subr.bf16.mxu0 0
        %412 = vmatpush1.bf16.msra.mxu0 0
        %413 = vmatprep.subr.bf16.mxu0 0
        %414 = vmatpush1.bf16.msra.mxu0 0
        %415 = vmatprep.mubr.bf16.mxu0 0
        %416 = vmatmul.mubr.bf16.gmra.mrb[0].mxu0 %v377
        %v417 = vpop.f32.mrb[0].mxu0
        %v418 = vadd.f32 0.0, %v417
        %v419 = vpop.f32.mrb[0].mxu0
        %v420 = vpop.f32.mrb[0].mxu0
        %v421 = vpop.f32.mrb[0].mxu0
        %422 = vdwg.mxu0
        %v423 = vld [vmem:[#allocation7] sm:$0x3]
        %v424 = vpack.c.bf16 %v418, %v418
        %vm425 = vcmask 31744
        %v427 = vsel %vm425, %v424, 0
        %vm429 = vcmask 1041408
        %v431 = vsel %vm429, %v423, 0
        %433 = vmatprep.subr.bf16.mxu0 0
        %434 = vmatpush1.bf16.msra.mxu0 %v431
        %435 = vmatprep.subr.bf16.mxu0 0
        %436 = vmatpush1.bf16.msra.mxu0 0
        %437 = vmatprep.subr.bf16.mxu0 0
        %438 = vmatpush1.bf16.msra.mxu0 0
        %439 = vmatprep.subr.bf16.mxu0 0
        %440 = vmatpush1.bf16.msra.mxu0 0
        %441 = vmatprep.subr.bf16.mxu0 0
        %442 = vmatpush1.bf16.msra.mxu0 0
        %443 = vmatprep.subr.bf16.mxu0 0
        %444 = vmatpush1.bf16.msra.mxu0 0
        %445 = vmatprep.subr.bf16.mxu0 0
        %446 = vmatpush1.bf16.msra.mxu0 0
        %447 = vmatprep.subr.bf16.mxu0 0
        %448 = vmatpush1.bf16.msra.mxu0 0
        %449 = vmatprep.subr.bf16.mxu0 0
        %450 = vmatpush1.bf16.msra.mxu0 0
        %451 = vmatprep.subr.bf16.mxu0 0
        %452 = vmatpush1.bf16.msra.mxu0 0
        %453 = vmatprep.subr.bf16.mxu0 0
        %454 = vmatpush1.bf16.msra.mxu0 0
        %455 = vmatprep.subr.bf16.mxu0 0
        %456 = vmatpush1.bf16.msra.mxu0 0
        %457 = vmatprep.subr.bf16.mxu0 0
        %458 = vmatpush1.bf16.msra.mxu0 0
        %459 = vmatprep.subr.bf16.mxu0 0
        %460 = vmatpush1.bf16.msra.mxu0 0
        %461 = vmatprep.subr.bf16.mxu0 0
        %462 = vmatpush1.bf16.msra.mxu0 0
        %463 = vmatprep.subr.bf16.mxu0 0
        %464 = vmatpush1.bf16.msra.mxu0 0
        %465 = vmatprep.mubr.bf16.mxu0 0
        %466 = vmatmul.mubr.bf16.gmra.mrb[0].mxu0 %v427
        %v467 = vpop.f32.mrb[0].mxu0
        %v468 = vadd.f32 0.0, %v467
        %v469 = vpop.f32.mrb[0].mxu0
        %v470 = vpop.f32.mrb[0].mxu0
        %v471 = vpop.f32.mrb[0].mxu0
        %472 = vdwg.mxu0
        %v473 = vmax.f32 %v468, 0.0
        %v474 = vpack.c.bf16 %v473, %v473
        %v476 = vsel %vm379, %v474, 0
        %478 = vmatprep.subr.bf16.mxu0 0
        %479 = vmatpush1.bf16.msra.mxu0 %v476
        %480 = vmatprep.subr.bf16.mxu0 0
        %481 = vmatpush1.bf16.msra.mxu0 0
        %482 = vmatprep.subr.bf16.mxu0 0
        %483 = vmatpush1.bf16.msra.mxu0 0
        %484 = vmatprep.subr.bf16.mxu0 0
        %485 = vmatpush1.bf16.msra.mxu0 0
        %486 = vmatprep.subr.bf16.mxu0 0
        %487 = vmatpush1.bf16.msra.mxu0 0
        %488 = vmatprep.subr.bf16.mxu0 0
        %489 = vmatpush1.bf16.msra.mxu0 0
        %490 = vmatprep.subr.bf16.mxu0 0
        %491 = vmatpush1.bf16.msra.mxu0 0
        %492 = vmatprep.subr.bf16.mxu0 0
        %493 = vmatpush1.bf16.msra.mxu0 0
        %494 = vmatprep.subr.bf16.mxu0 0
        %495 = vmatpush1.bf16.msra.mxu0 0
        %496 = vmatprep.subr.bf16.mxu0 0
        %497 = vmatpush1.bf16.msra.mxu0 0
        %498 = vmatprep.subr.bf16.mxu0 0
        %499 = vmatpush1.bf16.msra.mxu0 0
        %500 = vmatprep.subr.bf16.mxu0 0
        %501 = vmatpush1.bf16.msra.mxu0 0
        %502 = vmatprep.subr.bf16.mxu0 0
        %503 = vmatpush1.bf16.msra.mxu0 0
        %504 = vmatprep.subr.bf16.mxu0 0
        %505 = vmatpush1.bf16.msra.mxu0 0
        %506 = vmatprep.subr.bf16.mxu0 0
        %507 = vmatpush1.bf16.msra.mxu0 0
        %508 = vmatprep.subr.bf16.mxu0 0
        %509 = vmatpush1.bf16.msra.mxu0 0
        %510 = vmatprep.mubr.bf16.mxu0 0
        %511 = vmatmul.mubr.bf16.gmra.mrb[0].mxu0 %v377
        %v512 = vpop.f32.mrb[0].mxu0
        %v513 = vadd.f32 0.0, %v512
        %v514 = vpop.f32.mrb[0].mxu0
        %v515 = vpop.f32.mrb[0].mxu0
        %v516 = vpop.f32.mrb[0].mxu0
        %517 = vdwg.mxu0
        %v518 = vld [vmem:[#allocation7 + $0x8] sm:$0xf]
        %v519 = vld [vmem:[#allocation7 + $0xc] sm:$0xf]
        %v520 = vld [vmem:[#allocation7 + $0x10] sm:$0xf]
        %v521 = vld [vmem:[#allocation7 + $0x14] sm:$0xf]
        %v522 = vpack.c.bf16 %v513, %v513
        %v527 = vunpack.c.l.b16 %v518
        %v528 = vunpack.c.l.b16 %v519
        %v529 = vunpack.c.l.b16 %v520
        %v530 = vunpack.c.l.b16 %v521
        %v531 = vpack.c.b16 %v528, %v527
        %v532 = vpack.c.b16 %v530, %v529
        %vm535 = vcmask 261120
        %v537 = vsel %vm535, %v522, 0
        %539 = vmatprep.subr.bf16.mxu0 0
        %540 = vmatpush1.bf16.msra.mxu0 %v531
        %541 = vmatprep.subr.bf16.mxu0 0
        %542 = vmatpush1.bf16.msra.mxu0 %v532
        %543 = vmatprep.subr.bf16.mxu0 0
        %544 = vmatpush1.bf16.msra.mxu0 0
        %545 = vmatprep.subr.bf16.mxu0 0
        %546 = vmatpush1.bf16.msra.mxu0 0
        %547 = vmatprep.subr.bf16.mxu0 0
        %548 = vmatpush1.bf16.msra.mxu0 0
        %549 = vmatprep.subr.bf16.mxu0 0
        %550 = vmatpush1.bf16.msra.mxu0 0
        %551 = vmatprep.subr.bf16.mxu0 0
        %552 = vmatpush1.bf16.msra.mxu0 0
        %553 = vmatprep.subr.bf16.mxu0 0
        %554 = vmatpush1.bf16.msra.mxu0 0
        %555 = vmatprep.subr.bf16.mxu0 0
        %556 = vmatpush1.bf16.msra.mxu0 0
        %557 = vmatprep.subr.bf16.mxu0 0
        %558 = vmatpush1.bf16.msra.mxu0 0
        %559 = vmatprep.subr.bf16.mxu0 0
        %560 = vmatpush1.bf16.msra.mxu0 0
        %561 = vmatprep.subr.bf16.mxu0 0
        %562 = vmatpush1.bf16.msra.mxu0 0
        %563 = vmatprep.subr.bf16.mxu0 0
        %564 = vmatpush1.bf16.msra.mxu0 0
        %565 = vmatprep.subr.bf16.mxu0 0
        %566 = vmatpush1.bf16.msra.mxu0 0
        %567 = vmatprep.subr.bf16.mxu0 0
        %568 = vmatpush1.bf16.msra.mxu0 0
        %569 = vmatprep.subr.bf16.mxu0 0
        %570 = vmatpush1.bf16.msra.mxu0 0
        %571 = vmatprep.mubr.bf16.mxu0 0
        %572 = vmatmul.mubr.bf16.gmra.mrb[0].mxu0 %v537
        %v573 = vpop.f32.mrb[0].mxu0
        %v574 = vadd.f32 0.0, %v573
        %v575 = vpop.f32.mrb[0].mxu0
        %v576 = vpop.f32.mrb[0].mxu0
        %v577 = vpop.f32.mrb[0].mxu0
        %578 = vdwg.mxu0
        %v579 = vmax.f32 %v574, 0.0
        %v580 = vlaneseq
        %vm581 = vcmp.ge.s32.totalorder %v580, 0
        %vm582 = vcmp.lt.s32.totalorder %v580, 16
        %vm583 = vmand %vm581, %vm582
        %584 = vst.msk [vmem:[#allocation2] sm:$0x1] %vm583, %v579
        %v587 = vunpack.c.l.s4 1966171168
        %v588 = vunpack.c.0.s8 %v587
        %v589 = vlaneseq
        %v590 = vshrl.u32 %v589, 7
        %v591 = vsub.s32 %v588, %v590
        %v592 = vrot.slane %v579, %v591
        %v593 = vcombine.high %v592, %v592
        %v595 = vunpack.c.l.s4 1966171168
        %v596 = vunpack.c.0.s8 %v595
        %v597 = vlaneseq
        %v598 = vshrl.u32 %v597, 7
        %v599 = vsub.s32 %v596, %v598
        %v600 = vrot.slane %v592, %v599
        %v602 = vunpack.c.l.s4 1966171168
        %v603 = vunpack.c.0.s8 %v602
        %v604 = vlaneseq
        %v605 = vshrl.u32 %v604, 7
        %v606 = vsub.s32 %v603, %v605
        %v607 = vrot.slane %v593, %v606
        %608 = vrot.lane.b32.xlu0 %v607, 16
        %v609 = vpop.permute.xlu0 %608
        %vm611 = vcmp.ge.s32.totalorder %v580, 16
        %vm612 = vcmp.lt.s32.totalorder %v580, 32
        %vm613 = vmand %vm611, %vm612
        %614 = vst.msk [vmem:[#allocation2] sm:$0x1] %vm613, %v609
        %v615 = vcombine.high %v600, %v600
        %616 = vrot.lane.b32.xlu0 %v615, 32
        %v617 = vpop.permute.xlu0 %616
        %vm619 = vcmp.ge.s32.totalorder %v580, 32
        %vm620 = vcmp.lt.s32.totalorder %v580, 48
        %vm621 = vmand %vm619, %vm620
        %622 = vst.msk [vmem:[#allocation2] sm:$0x1] %vm621, %v617
        %v623 = vcombine.high %v607, %v607
        %624 = vrot.lane.b32.xlu0 %v623, 48
        %v625 = vpop.permute.xlu0 %624
        %vm627 = vcmp.ge.s32.totalorder %v580, 48
        %vm628 = vcmp.lt.s32.totalorder %v580, 64
        %vm629 = vmand %vm627, %vm628
        %630 = vst.msk [vmem:[#allocation2] sm:$0x1] %vm629, %v625
        %v631 = vcombine.high %v579, %v579
        %v633 = vunpack.c.l.s4 1966171168
        %v634 = vunpack.c.0.s8 %v633
        %v635 = vlaneseq
        %v636 = vshrl.u32 %v635, 7
        %v637 = vsub.s32 %v634, %v636
        %v638 = vrot.slane %v631, %v637
        %v640 = vunpack.c.l.s4 1966171168
        %v641 = vunpack.c.0.s8 %v640
        %v642 = vlaneseq
        %v643 = vshrl.u32 %v642, 7
        %v644 = vsub.s32 %v641, %v643
        %v645 = vrot.slane %v638, %v644
        %646 = vrot.lane.b32.xlu0 %v645, 64
        %v647 = vpop.permute.xlu0 %646
        %vm649 = vcmp.ge.s32.totalorder %v580, 64
        %vm650 = vcmp.lt.s32.totalorder %v580, 80
        %vm651 = vmand %vm649, %vm650
        %652 = vst.msk [vmem:[#allocation2] sm:$0x1] %vm651, %v647
        %v653 = vcombine.high %v638, %v638
        %v655 = vunpack.c.l.s4 1966171168
        %v656 = vunpack.c.0.s8 %v655
        %v657 = vlaneseq
        %v658 = vshrl.u32 %v657, 7
        %v659 = vsub.s32 %v656, %v658
        %v660 = vrot.slane %v653, %v659
        %661 = vrot.lane.b32.xlu0 %v660, 80
        %v662 = vpop.permute.xlu0 %661
        %vm664 = vcmp.ge.s32.totalorder %v580, 80
        %vm665 = vcmp.lt.s32.totalorder %v580, 96
        %vm666 = vmand %vm664, %vm665
        %667 = vst.msk [vmem:[#allocation2] sm:$0x1] %vm666, %v662
        %v668 = vcombine.high %v645, %v645
        %669 = vrot.lane.b32.xlu0 %v668, 96
        %v670 = vpop.permute.xlu0 %669
        %vm672 = vcmp.ge.s32.totalorder %v580, 96
        %vm673 = vcmp.lt.s32.totalorder %v580, 112
        %vm674 = vmand %vm672, %vm673
        %675 = vst.msk [vmem:[#allocation2] sm:$0x1] %vm674, %v670
        %v676 = vcombine.high %v660, %v660
        %677 = vrot.lane.b32.xlu0 %v676, 112
        %v678 = vpop.permute.xlu0 %677
        %vm680 = vcmp.ge.s32.totalorder %v580, 112
        %vm681 = vcmp.lt.s32.totalorder %v580, 128
        %vm682 = vmand %vm680, %vm681
        %683 = vst.msk [vmem:[#allocation2] sm:$0x1] %vm682, %v678
        %vm684 = vcmp.lt.s32.totalorder %v580, 4
        %vm685 = vmand %vm581, %vm684
        %686 = vst.msk [vmem:[#allocation2 + $0x1] sm:$0x1] %vm685, %v372
        %v687 = vld [vmem:[#allocation2] sm:$0x3]
        %v688 = vld [vmem:[#allocation7 + $0x18] sm:$0xf]
        %v689 = vld [vmem:[#allocation7 + $0x1c] sm:$0xf]
        %v690 = vld [vmem:[#allocation7 + $0x20] sm:$0xf]
        %v691 = vld [vmem:[#allocation7 + $0x24] sm:$0xf]
        %v692 = vld [vmem:[#allocation7 + $0x28] sm:$0xf]
        %v693 = vld [vmem:[#allocation7 + $0x2c] sm:$0xf]
        %v694 = vld [vmem:[#allocation7 + $0x30] sm:$0xf]
        %v695 = vld [vmem:[#allocation7 + $0x34] sm:$0xf]
        %v696 = vld [vmem:[#allocation7 + $0x38] sm:$0xf]
        %v697 = vld [vmem:[#allocation7 + $0x3c] sm:$0xf]
        %v698 = vld [vmem:[#allocation7 + $0x40] sm:$0xf]
        %v699 = vld [vmem:[#allocation7 + $0x44] sm:$0xf]
        %v700 = vld [vmem:[#allocation7 + $0x48] sm:$0xf]
        %v701 = vld [vmem:[#allocation7 + $0x4c] sm:$0xf]
        %v702 = vld [vmem:[#allocation7 + $0x50] sm:$0xf]
        %v703 = vld [vmem:[#allocation7 + $0x54] sm:$0xf]
        %v704 = vld [vmem:[#allocation7 + $0x58] sm:$0x3]
        %v706 = vlaneseq
        %v707 = vshrl.u32 %v706, 7
        %v708 = vsub.s32 0, %v707
        %v709 = vrot.slane %v687, %v708
        %v710 = vlaneseq
        %v711 = vshrl.u32 %v710, 7
        %v712 = vsub.s32 1, %v711
        %v713 = vrot.slane %v687, %v712
        %v716 = vpack.c.bf16 %v709, %v709
        %v717 = vpack.c.bf16 %v713, %v713
        %v718 = vld [vmem:[%s6] sm:$0x1]
        %v736 = vunpack.c.l.b16 %v688
        %v737 = vunpack.c.l.b16 %v689
        %v738 = vunpack.c.l.b16 %v690
        %v739 = vunpack.c.l.b16 %v691
        %v740 = vunpack.c.l.b16 %v692
        %v741 = vunpack.c.l.b16 %v693
        %v742 = vunpack.c.l.b16 %v694
        %v743 = vunpack.c.l.b16 %v695
        %v744 = vunpack.c.l.b16 %v696
        %v745 = vunpack.c.l.b16 %v697
        %v746 = vunpack.c.l.b16 %v698
        %v747 = vunpack.c.l.b16 %v699
        %v748 = vunpack.c.l.b16 %v700
        %v749 = vunpack.c.l.b16 %v701
        %v750 = vunpack.c.l.b16 %v702
        %v751 = vunpack.c.l.b16 %v703
        %v752 = vunpack.c.l.b16 %v704
        %v753 = vpack.c.b16 %v737, %v736
        %v754 = vpack.c.b16 %v739, %v738
        %v755 = vpack.c.b16 %v741, %v740
        %v756 = vpack.c.b16 %v743, %v742
        %v757 = vpack.c.b16 %v745, %v744
        %v758 = vpack.c.b16 %v747, %v746
        %v759 = vpack.c.b16 %v749, %v748
        %v760 = vpack.c.b16 %v751, %v750
        %v761 = vpack.c.b16 %v752, %v752
        %v771 = vsel %vm425, %v717, 0
        %v774 = vsel %vm429, %v761, 0
        %776 = vmatprep.subr.bf16.mxu0 0
        %777 = vmatpush1.bf16.msra.mxu0 %v753
        %778 = vmatprep.subr.bf16.mxu0 0
        %779 = vmatpush1.bf16.msra.mxu0 %v754
        %780 = vmatprep.subr.bf16.mxu0 0
        %781 = vmatpush1.bf16.msra.mxu0 %v755
        %782 = vmatprep.subr.bf16.mxu0 0
        %783 = vmatpush1.bf16.msra.mxu0 %v756
        %784 = vmatprep.subr.bf16.mxu0 0
        %785 = vmatpush1.bf16.msra.mxu0 %v757
        %786 = vmatprep.subr.bf16.mxu0 0
        %787 = vmatpush1.bf16.msra.mxu0 %v758
        %788 = vmatprep.subr.bf16.mxu0 0
        %789 = vmatpush1.bf16.msra.mxu0 %v759
        %790 = vmatprep.subr.bf16.mxu0 0
        %791 = vmatpush1.bf16.msra.mxu0 %v760
        %792 = vmatprep.subr.bf16.mxu0 0
        %793 = vmatpush1.bf16.msra.mxu0 %v774
        %794 = vmatprep.subr.bf16.mxu0 0
        %795 = vmatpush1.bf16.msra.mxu0 0
        %796 = vmatprep.subr.bf16.mxu0 0
        %797 = vmatpush1.bf16.msra.mxu0 0
        %798 = vmatprep.subr.bf16.mxu0 0
        %799 = vmatpush1.bf16.msra.mxu0 0
        %800 = vmatprep.subr.bf16.mxu0 0
        %801 = vmatpush1.bf16.msra.mxu0 0
        %802 = vmatprep.subr.bf16.mxu0 0
        %803 = vmatpush1.bf16.msra.mxu0 0
        %804 = vmatprep.subr.bf16.mxu0 0
        %805 = vmatpush1.bf16.msra.mxu0 0
        %806 = vmatprep.subr.bf16.mxu0 0
        %807 = vmatpush1.bf16.msra.mxu0 0
        %808 = vmatprep.mubr.bf16.mxu0 %v771
        %809 = vmatmul.mubr.bf16.gmra.mrb[0].mxu0 %v716
        %v810 = vpop.f32.mrb[0].mxu0
        %v811 = vadd.f32 %v718, %v810
        %v812 = vpop.f32.mrb[0].mxu0
        %v813 = vpop.f32.mrb[0].mxu0
        %v814 = vpop.f32.mrb[0].mxu0
        %815 = vdwg.mxu0
        %v816 = vmax.f32 %v811, 0.0
        %v817 = vld [vmem:[#allocation7 + $0x60] sm:$0xf]
        %v818 = vld [vmem:[#allocation7 + $0x64] sm:$0xf]
        %v819 = vld [vmem:[#allocation7 + $0x68] sm:$0xf]
        %v820 = vld [vmem:[#allocation7 + $0x6c] sm:$0xf]
        %v821 = vld [vmem:[#allocation7 + $0x70] sm:$0xf]
        %v822 = vld [vmem:[#allocation7 + $0x74] sm:$0xf]
        %v823 = vld [vmem:[#allocation7 + $0x78] sm:$0xf]
        %v824 = vld [vmem:[#allocation7 + $0x7c] sm:$0xf]
        %v825 = vld [vmem:[#allocation7 + $0x80] sm:$0xf]
        %v826 = vld [vmem:[#allocation7 + $0x84] sm:$0xf]
        %v827 = vld [vmem:[#allocation7 + $0x88] sm:$0xf]
        %v828 = vld [vmem:[#allocation7 + $0x8c] sm:$0xf]
        %v829 = vld [vmem:[#allocation7 + $0x90] sm:$0xf]
        %v830 = vld [vmem:[#allocation7 + $0x94] sm:$0xf]
        %v831 = vld [vmem:[#allocation7 + $0x98] sm:$0xf]
        %v832 = vld [vmem:[#allocation7 + $0x9c] sm:$0xf]
        %v833 = vpack.c.bf16 %v816, %v816
        %v834 = vld [vmem:[%s6 + $0x1] sm:$0x1]
        %v851 = vunpack.c.l.b16 %v817
        %v852 = vunpack.c.l.b16 %v818
        %v853 = vunpack.c.l.b16 %v819
        %v854 = vunpack.c.l.b16 %v820
        %v855 = vunpack.c.l.b16 %v821
        %v856 = vunpack.c.l.b16 %v822
        %v857 = vunpack.c.l.b16 %v823
        %v858 = vunpack.c.l.b16 %v824
        %v859 = vunpack.c.l.b16 %v825
        %v860 = vunpack.c.l.b16 %v826
        %v861 = vunpack.c.l.b16 %v827
        %v862 = vunpack.c.l.b16 %v828
        %v863 = vunpack.c.l.b16 %v829
        %v864 = vunpack.c.l.b16 %v830
        %v865 = vunpack.c.l.b16 %v831
        %v866 = vunpack.c.l.b16 %v832
        %v867 = vpack.c.b16 %v852, %v851
        %v868 = vpack.c.b16 %v854, %v853
        %v869 = vpack.c.b16 %v856, %v855
        %v870 = vpack.c.b16 %v858, %v857
        %v871 = vpack.c.b16 %v860, %v859
        %v872 = vpack.c.b16 %v862, %v861
        %v873 = vpack.c.b16 %v864, %v863
        %v874 = vpack.c.b16 %v866, %v865
        %883 = vmatprep.subr.bf16.mxu0 0
        %884 = vmatpush1.bf16.msra.mxu0 %v867
        %885 = vmatprep.subr.bf16.mxu0 0
        %886 = vmatpush1.bf16.msra.mxu0 %v868
        %887 = vmatprep.subr.bf16.mxu0 0
        %888 = vmatpush1.bf16.msra.mxu0 %v869
        %889 = vmatprep.subr.bf16.mxu0 0
        %890 = vmatpush1.bf16.msra.mxu0 %v870
        %891 = vmatprep.subr.bf16.mxu0 0
        %892 = vmatpush1.bf16.msra.mxu0 %v871
        %893 = vmatprep.subr.bf16.mxu0 0
        %894 = vmatpush1.bf16.msra.mxu0 %v872
        %895 = vmatprep.subr.bf16.mxu0 0
        %896 = vmatpush1.bf16.msra.mxu0 %v873
        %897 = vmatprep.subr.bf16.mxu0 0
        %898 = vmatpush1.bf16.msra.mxu0 %v874
        %899 = vmatprep.subr.bf16.mxu0 0
        %900 = vmatpush1.bf16.msra.mxu0 0
        %901 = vmatprep.subr.bf16.mxu0 0
        %902 = vmatpush1.bf16.msra.mxu0 0
        %903 = vmatprep.subr.bf16.mxu0 0
        %904 = vmatpush1.bf16.msra.mxu0 0
        %905 = vmatprep.subr.bf16.mxu0 0
        %906 = vmatpush1.bf16.msra.mxu0 0
        %907 = vmatprep.subr.bf16.mxu0 0
        %908 = vmatpush1.bf16.msra.mxu0 0
        %909 = vmatprep.subr.bf16.mxu0 0
        %910 = vmatpush1.bf16.msra.mxu0 0
        %911 = vmatprep.subr.bf16.mxu0 0
        %912 = vmatpush1.bf16.msra.mxu0 0
        %913 = vmatprep.subr.bf16.mxu0 0
        %914 = vmatpush1.bf16.msra.mxu0 0
        %915 = vmatprep.mubr.bf16.mxu0 0
        %916 = vmatmul.mubr.bf16.gmra.mrb[0].mxu0 %v833
        %v917 = vpop.f32.mrb[0].mxu0
        %v918 = vadd.f32 %v834, %v917
        %v919 = vpop.f32.mrb[0].mxu0
        %v920 = vpop.f32.mrb[0].mxu0
        %v921 = vpop.f32.mrb[0].mxu0
        %922 = vdwg.mxu0
        %v923 = vld [vmem:[#allocation7 + $0xa0] sm:$0x3]
        %v924 = vpack.c.bf16 %v370, %v370
        %v925 = vld [vmem:[%s6 + $0x2] sm:$0x1]
        %v927 = vsel %vm425, %v924, 0
        %v930 = vsel %vm429, %v923, 0
        %932 = vmatprep.subr.bf16.mxu0 0
        %933 = vmatpush1.bf16.msra.mxu0 %v930
        %934 = vmatprep.subr.bf16.mxu0 0
        %935 = vmatpush1.bf16.msra.mxu0 0
        %936 = vmatprep.subr.bf16.mxu0 0
        %937 = vmatpush1.bf16.msra.mxu0 0
        %938 = vmatprep.subr.bf16.mxu0 0
        %939 = vmatpush1.bf16.msra.mxu0 0
        %940 = vmatprep.subr.bf16.mxu0 0
        %941 = vmatpush1.bf16.msra.mxu0 0
        %942 = vmatprep.subr.bf16.mxu0 0
        %943 = vmatpush1.bf16.msra.mxu0 0
        %944 = vmatprep.subr.bf16.mxu0 0
        %945 = vmatpush1.bf16.msra.mxu0 0
        %946 = vmatprep.subr.bf16.mxu0 0
        %947 = vmatpush1.bf16.msra.mxu0 0
        %948 = vmatprep.subr.bf16.mxu0 0
        %949 = vmatpush1.bf16.msra.mxu0 0
        %950 = vmatprep.subr.bf16.mxu0 0
        %951 = vmatpush1.bf16.msra.mxu0 0
        %952 = vmatprep.subr.bf16.mxu0 0
        %953 = vmatpush1.bf16.msra.mxu0 0
        %954 = vmatprep.subr.bf16.mxu0 0
        %955 = vmatpush1.bf16.msra.mxu0 0
        %956 = vmatprep.subr.bf16.mxu0 0
        %957 = vmatpush1.bf16.msra.mxu0 0
        %958 = vmatprep.subr.bf16.mxu0 0
        %959 = vmatpush1.bf16.msra.mxu0 0
        %960 = vmatprep.subr.bf16.mxu0 0
        %961 = vmatpush1.bf16.msra.mxu0 0
        %962 = vmatprep.subr.bf16.mxu0 0
        %963 = vmatpush1.bf16.msra.mxu0 0
        %964 = vmatprep.mubr.bf16.mxu0 0
        %965 = vmatmul.mubr.bf16.gmra.mrb[0].mxu0 %v927
        %v966 = vpop.f32.mrb[0].mxu0
        %v967 = vadd.f32 %v925, %v966
        %v968 = vpop.f32.mrb[0].mxu0
        %v969 = vpop.f32.mrb[0].mxu0
        %v970 = vpop.f32.mrb[0].mxu0
        %971 = vdwg.mxu0
        %v972 = vmax.f32 %v967, 0.0
        %v973 = vld [vmem:[#allocation7 + $0xa8] sm:$0xf]
        %v974 = vld [vmem:[#allocation7 + $0xac] sm:$0xf]
        %v975 = vld [vmem:[#allocation7 + $0xb0] sm:$0xf]
        %v976 = vld [vmem:[#allocation7 + $0xb4] sm:$0xf]
        %v977 = vpack.c.bf16 %v972, %v972
        %v978 = vld [vmem:[%s6 + $0x3] sm:$0x1]
        %v983 = vunpack.c.l.b16 %v973
        %v984 = vunpack.c.l.b16 %v974
        %v985 = vunpack.c.l.b16 %v975
        %v986 = vunpack.c.l.b16 %v976
        %v987 = vpack.c.b16 %v984, %v983
        %v988 = vpack.c.b16 %v986, %v985
        %v992 = vsel %vm535, %v977, 0
        %994 = vmatprep.subr.bf16.mxu0 0
        %995 = vmatpush1.bf16.msra.mxu0 %v987
        %996 = vmatprep.subr.bf16.mxu0 0
        %997 = vmatpush1.bf16.msra.mxu0 %v988
        %998 = vmatprep.subr.bf16.mxu0 0
        %999 = vmatpush1.bf16.msra.mxu0 0
        %1000 = vmatprep.subr.bf16.mxu0 0
        %1001 = vmatpush1.bf16.msra.mxu0 0
        %1002 = vmatprep.subr.bf16.mxu0 0
        %1003 = vmatpush1.bf16.msra.mxu0 0
        %1004 = vmatprep.subr.bf16.mxu0 0
        %1005 = vmatpush1.bf16.msra.mxu0 0
        %1006 = vmatprep.subr.bf16.mxu0 0
        %1007 = vmatpush1.bf16.msra.mxu0 0
        %1008 = vmatprep.subr.bf16.mxu0 0
        %1009 = vmatpush1.bf16.msra.mxu0 0
        %1010 = vmatprep.subr.bf16.mxu0 0
        %1011 = vmatpush1.bf16.msra.mxu0 0
        %1012 = vmatprep.subr.bf16.mxu0 0
        %1013 = vmatpush1.bf16.msra.mxu0 0
        %1014 = vmatprep.subr.bf16.mxu0 0
        %1015 = vmatpush1.bf16.msra.mxu0 0
        %1016 = vmatprep.subr.bf16.mxu0 0
        %1017 = vmatpush1.bf16.msra.mxu0 0
        %1018 = vmatprep.subr.bf16.mxu0 0
        %1019 = vmatpush1.bf16.msra.mxu0 0
        %1020 = vmatprep.subr.bf16.mxu0 0
        %1021 = vmatpush1.bf16.msra.mxu0 0
        %1022 = vmatprep.subr.bf16.mxu0 0
        %1023 = vmatpush1.bf16.msra.mxu0 0
        %1024 = vmatprep.subr.bf16.mxu0 0
        %1025 = vmatpush1.bf16.msra.mxu0 0
        %1026 = vmatprep.mubr.bf16.mxu0 0
        %1027 = vmatmul.mubr.bf16.gmra.mrb[0].mxu0 %v992
        %v1028 = vpop.f32.mrb[0].mxu0
        %v1029 = vadd.f32 %v978, %v1028
        %v1030 = vpop.f32.mrb[0].mxu0
        %v1031 = vpop.f32.mrb[0].mxu0
        %v1032 = vpop.f32.mrb[0].mxu0
        %1033 = vdwg.mxu0
        %v1034 = vmax.f32 %v1029, 0.0
        %v1035 = vld [vmem:[#allocation7 + $0xb8] sm:$0xf]
        %v1036 = vld [vmem:[#allocation7 + $0xbc] sm:$0xf]
        %v1037 = vpack.c.bf16 %v1034, %v1034
        %v1038 = vld [vmem:[%s6 + $0x4] sm:$0x1]
        %v1041 = vunpack.c.l.b16 %v1035
        %v1042 = vunpack.c.l.b16 %v1036
        %v1043 = vpack.c.b16 %v1042, %v1041
        %vm1045 = vcmask 130048
        %v1047 = vsel %vm1045, %v1037, 0
        %1049 = vmatprep.subr.bf16.mxu0 0
        %1050 = vmatpush1.bf16.msra.mxu0 %v1043
        %1051 = vmatprep.subr.bf16.mxu0 0
        %1052 = vmatpush1.bf16.msra.mxu0 0
        %1053 = vmatprep.subr.bf16.mxu0 0
        %1054 = vmatpush1.bf16.msra.mxu0 0
        %1055 = vmatprep.subr.bf16.mxu0 0
        %1056 = vmatpush1.bf16.msra.mxu0 0
        %1057 = vmatprep.subr.bf16.mxu0 0
        %1058 = vmatpush1.bf16.msra.mxu0 0
        %1059 = vmatprep.subr.bf16.mxu0 0
        %1060 = vmatpush1.bf16.msra.mxu0 0
        %1061 = vmatprep.subr.bf16.mxu0 0
        %1062 = vmatpush1.bf16.msra.mxu0 0
        %1063 = vmatprep.subr.bf16.mxu0 0
        %1064 = vmatpush1.bf16.msra.mxu0 0
        %1065 = vmatprep.subr.bf16.mxu0 0
        %1066 = vmatpush1.bf16.msra.mxu0 0
        %1067 = vmatprep.subr.bf16.mxu0 0
        %1068 = vmatpush1.bf16.msra.mxu0 0
        %1069 = vmatprep.subr.bf16.mxu0 0
        %1070 = vmatpush1.bf16.msra.mxu0 0
        %1071 = vmatprep.subr.bf16.mxu0 0
        %1072 = vmatpush1.bf16.msra.mxu0 0
        %1073 = vmatprep.subr.bf16.mxu0 0
        %1074 = vmatpush1.bf16.msra.mxu0 0
        %1075 = vmatprep.subr.bf16.mxu0 0
        %1076 = vmatpush1.bf16.msra.mxu0 0
        %1077 = vmatprep.subr.bf16.mxu0 0
        %1078 = vmatpush1.bf16.msra.mxu0 0
        %1079 = vmatprep.subr.bf16.mxu0 0
        %1080 = vmatpush1.bf16.msra.mxu0 0
        %1081 = vmatprep.mubr.bf16.mxu0 0
        %1082 = vmatmul.mubr.bf16.gmra.mrb[0].mxu0 %v1047
        %v1083 = vpop.f32.mrb[0].mxu0
        %v1084 = vadd.f32 %v1038, %v1083
        %v1085 = vpop.f32.mrb[0].mxu0
        %v1086 = vpop.f32.mrb[0].mxu0
        %v1087 = vpop.f32.mrb[0].mxu0
        %1088 = vdwg.mxu0
        %vm1089 = vcmask 57344
        %1090 = vst.msk [vmem:[#allocation3] sm:$0x1] %vm1089, %v371
        %v1092 = vlaneseq
        %v1093 = vshrl.u32 %v1092, 7
        %v1094 = vsub.s32 0, %v1093
        %v1095 = vrot.slane %v372, %v1094
        %1096 = vrot.lane.b32.xlu0 %v1095, 8
        %v1097 = vpop.permute.xlu0 %1096
        %vm1099 = vcmask 90176
        %1100 = vst.msk [vmem:[#allocation3] sm:$0x1] %vm1099, %v1097
        %1102 = vrot.lane.b32.xlu0 %v1084, 12
        %v1103 = vpop.permute.xlu0 %1102
        %vm1105 = vcmask 155744
        %1106 = vst.msk [vmem:[#allocation3] sm:$0x1] %vm1105, %v1103
        %1108 = vrot.lane.b32.xlu0 %v918, 20
        %v1109 = vpop.permute.xlu0 %1108
        %vm1111 = vcmask 221344
        %1112 = vst.msk [vmem:[#allocation3] sm:$0x1] %vm1111, %v1109
        %v1113 = vld [vmem:[#allocation3] sm:$0x1]
        %v1114 = vld [vmem:[#allocation7 + $0xc0] sm:$0xf]
        %v1115 = vld [vmem:[#allocation7 + $0xc4] sm:$0xf]
        %v1116 = vld [vmem:[#allocation7 + $0xc8] sm:$0xf]
        %v1117 = vld [vmem:[#allocation7 + $0xcc] sm:$0x3]
        %v1118 = vpack.c.bf16 %v1113, %v1113
        %v1119 = vld [vmem:[%s6 + $0x5] sm:$0x1]
        %v1124 = vunpack.c.l.b16 %v1114
        %v1125 = vunpack.c.l.b16 %v1115
        %v1126 = vunpack.c.l.b16 %v1116
        %v1127 = vunpack.c.l.b16 %v1117
        %v1128 = vpack.c.b16 %v1125, %v1124
        %v1129 = vpack.c.b16 %v1127, %v1126
        %vm1131 = vcmask 228352
        %v1133 = vsel %vm1131, %v1118, 0
        %vm1135 = vcmask 1045504
        %v1137 = vsel %vm1135, %v1129, 0
        %1139 = vmatprep.subr.bf16.mxu0 0
        %1140 = vmatpush1.bf16.msra.mxu0 %v1128
        %1141 = vmatprep.subr.bf16.mxu0 0
        %1142 = vmatpush1.bf16.msra.mxu0 %v1137
        %1143 = vmatprep.subr.bf16.mxu0 0
        %1144 = vmatpush1.bf16.msra.mxu0 0
        %1145 = vmatprep.subr.bf16.mxu0 0
        %1146 = vmatpush1.bf16.msra.mxu0 0
        %1147 = vmatprep.subr.bf16.mxu0 0
        %1148 = vmatpush1.bf16.msra.mxu0 0
        %1149 = vmatprep.subr.bf16.mxu0 0
        %1150 = vmatpush1.bf16.msra.mxu0 0
        %1151 = vmatprep.subr.bf16.mxu0 0
        %1152 = vmatpush1.bf16.msra.mxu0 0
        %1153 = vmatprep.subr.bf16.mxu0 0
        %1154 = vmatpush1.bf16.msra.mxu0 0
        %1155 = vmatprep.subr.bf16.mxu0 0
        %1156 = vmatpush1.bf16.msra.mxu0 0
        %1157 = vmatprep.subr.bf16.mxu0 0
        %1158 = vmatpush1.bf16.msra.mxu0 0
        %1159 = vmatprep.subr.bf16.mxu0 0
        %1160 = vmatpush1.bf16.msra.mxu0 0
        %1161 = vmatprep.subr.bf16.mxu0 0
        %1162 = vmatpush1.bf16.msra.mxu0 0
        %1163 = vmatprep.subr.bf16.mxu0 0
        %1164 = vmatpush1.bf16.msra.mxu0 0
        %1165 = vmatprep.subr.bf16.mxu0 0
        %1166 = vmatpush1.bf16.msra.mxu0 0
        %1167 = vmatprep.subr.bf16.mxu0 0
        %1168 = vmatpush1.bf16.msra.mxu0 0
        %1169 = vmatprep.subr.bf16.mxu0 0
        %1170 = vmatpush1.bf16.msra.mxu0 0
        %1171 = vmatprep.mubr.bf16.mxu0 0
        %1172 = vmatmul.mubr.bf16.gmra.mrb[0].mxu0 %v1133
        %v1173 = vpop.f32.mrb[0].mxu0
        %v1174 = vadd.f32 %v1119, %v1173
        %v1175 = vpop.f32.mrb[0].mxu0
        %v1176 = vpop.f32.mrb[0].mxu0
        %v1177 = vpop.f32.mrb[0].mxu0
        %1178 = vdwg.mxu0
        %v1179 = vxor.u32 %v1174, 2147483648
        %v1180 = vmul.f32 %v1179, 1.442695
        %v1181 = vpow.pop %v1180
        %v1182 = vadd.f32 %v1181, 1.0
        %v1183 = vrcp.pop %v1182
        %v1184 = vmul.f32 1.0, %v1183
        %v1185 = vld [vmem:[#allocation7 + $0xd0] sm:$0xf]
        %v1186 = vld [vmem:[#allocation7 + $0xd4] sm:$0xf]
        %v1187 = vld [vmem:[#allocation7 + $0xd8] sm:$0x3]
        %v1188 = vld [vmem:[%s6 + $0x6] sm:$0x1]
        %v1192 = vunpack.c.l.b16 %v1185
        %v1193 = vunpack.c.l.b16 %v1186
        %v1194 = vunpack.c.l.b16 %v1187
        %v1195 = vpack.c.b16 %v1193, %v1192
        %v1196 = vpack.c.b16 %v1194, %v1194
        %vm1198 = vcmask 162816
        %v1199 = vsel %vm1198, %v1118, 0
        %v1202 = vsel %vm429, %v1196, 0
        %1204 = vmatprep.subr.bf16.mxu0 0
        %1205 = vmatpush1.bf16.msra.mxu0 %v1195
        %1206 = vmatprep.subr.bf16.mxu0 0
        %1207 = vmatpush1.bf16.msra.mxu0 %v1202
        %1208 = vmatprep.subr.bf16.mxu0 0
        %1209 = vmatpush1.bf16.msra.mxu0 0
        %1210 = vmatprep.subr.bf16.mxu0 0
        %1211 = vmatpush1.bf16.msra.mxu0 0
        %1212 = vmatprep.subr.bf16.mxu0 0
        %1213 = vmatpush1.bf16.msra.mxu0 0
        %1214 = vmatprep.subr.bf16.mxu0 0
        %1215 = vmatpush1.bf16.msra.mxu0 0
        %1216 = vmatprep.subr.bf16.mxu0 0
        %1217 = vmatpush1.bf16.msra.mxu0 0
        %1218 = vmatprep.subr.bf16.mxu0 0
        %1219 = vmatpush1.bf16.msra.mxu0 0
        %1220 = vmatprep.subr.bf16.mxu0 0
        %1221 = vmatpush1.bf16.msra.mxu0 0
        %1222 = vmatprep.subr.bf16.mxu0 0
        %1223 = vmatpush1.bf16.msra.mxu0 0
        %1224 = vmatprep.subr.bf16.mxu0 0
        %1225 = vmatpush1.bf16.msra.mxu0 0
        %1226 = vmatprep.subr.bf16.mxu0 0
        %1227 = vmatpush1.bf16.msra.mxu0 0
        %1228 = vmatprep.subr.bf16.mxu0 0
        %1229 = vmatpush1.bf16.msra.mxu0 0
        %1230 = vmatprep.subr.bf16.mxu0 0
        %1231 = vmatpush1.bf16.msra.mxu0 0
        %1232 = vmatprep.subr.bf16.mxu0 0
        %1233 = vmatpush1.bf16.msra.mxu0 0
        %1234 = vmatprep.subr.bf16.mxu0 0
        %1235 = vmatpush1.bf16.msra.mxu0 0
        %1236 = vmatprep.mubr.bf16.mxu0 0
        %1237 = vmatmul.mubr.bf16.gmra.mrb[0].mxu0 %v1199
        %v1238 = vpop.f32.mrb[0].mxu0
        %v1239 = vadd.f32 %v1188, %v1238
        %v1240 = vpop.f32.mrb[0].mxu0
        %v1241 = vpop.f32.mrb[0].mxu0
        %v1242 = vpop.f32.mrb[0].mxu0
        %1243 = vdwg.mxu0
        %v1244 = vmax.f32 %v1239, 0.0
        %v1245 = vld [vmem:[#allocation7 + $0xe0] sm:$0xf]
        %v1246 = vld [vmem:[#allocation7 + $0xe4] sm:$0xf]
        %v1247 = vpack.c.bf16 %v1244, %v1244
        %v1248 = vld [vmem:[%s6 + $0x7] sm:$0x1]
        %v1251 = vunpack.c.l.b16 %v1245
        %v1252 = vunpack.c.l.b16 %v1246
        %v1253 = vpack.c.b16 %v1252, %v1251
        %v1256 = vsel %vm1045, %v1247, 0
        %1258 = vmatprep.subr.bf16.mxu0 0
        %1259 = vmatpush1.bf16.msra.mxu0 %v1253
        %1260 = vmatprep.subr.bf16.mxu0 0
        %1261 = vmatpush1.bf16.msra.mxu0 0
        %1262 = vmatprep.subr.bf16.mxu0 0
        %1263 = vmatpush1.bf16.msra.mxu0 0
        %1264 = vmatprep.subr.bf16.mxu0 0
        %1265 = vmatpush1.bf16.msra.mxu0 0
        %1266 = vmatprep.subr.bf16.mxu0 0
        %1267 = vmatpush1.bf16.msra.mxu0 0
        %1268 = vmatprep.subr.bf16.mxu0 0
        %1269 = vmatpush1.bf16.msra.mxu0 0
        %1270 = vmatprep.subr.bf16.mxu0 0
        %1271 = vmatpush1.bf16.msra.mxu0 0
        %1272 = vmatprep.subr.bf16.mxu0 0
        %1273 = vmatpush1.bf16.msra.mxu0 0
        %1274 = vmatprep.subr.bf16.mxu0 0
        %1275 = vmatpush1.bf16.msra.mxu0 0
        %1276 = vmatprep.subr.bf16.mxu0 0
        %1277 = vmatpush1.bf16.msra.mxu0 0
        %1278 = vmatprep.subr.bf16.mxu0 0
        %1279 = vmatpush1.bf16.msra.mxu0 0
        %1280 = vmatprep.subr.bf16.mxu0 0
        %1281 = vmatpush1.bf16.msra.mxu0 0
        %1282 = vmatprep.subr.bf16.mxu0 0
        %1283 = vmatpush1.bf16.msra.mxu0 0
        %1284 = vmatprep.subr.bf16.mxu0 0
        %1285 = vmatpush1.bf16.msra.mxu0 0
        %1286 = vmatprep.subr.bf16.mxu0 0
        %1287 = vmatpush1.bf16.msra.mxu0 0
        %1288 = vmatprep.subr.bf16.mxu0 0
        %1289 = vmatpush1.bf16.msra.mxu0 0
        %1290 = vmatprep.mubr.bf16.mxu0 0
        %1291 = vmatmul.mubr.bf16.gmra.mrb[0].mxu0 %v1256
        %v1292 = vpop.f32.mrb[0].mxu0
        %v1293 = vadd.f32 %v1248, %v1292
        %v1294 = vpop.f32.mrb[0].mxu0
        %v1295 = vpop.f32.mrb[0].mxu0
        %v1296 = vpop.f32.mrb[0].mxu0
        %1297 = vdwg.mxu0
        %v1298 = vmax.f32 %v1293, 0.0
        %v1299 = vld [vmem:[#allocation7 + $0xe8] sm:$0xf]
        %v1300 = vld [vmem:[#allocation7 + $0xec] sm:$0xf]
        %v1301 = vld [vmem:[#allocation7 + $0xf0] sm:$0xf]
        %v1302 = vld [vmem:[#allocation7 + $0xf4] sm:$0xf]
        %v1303 = vpack.c.bf16 %v1298, %v1298
        %v1304 = vld [vmem:[%s6 + $0x8] sm:$0x1]
        %v1309 = vunpack.c.l.b16 %v1299
        %v1310 = vunpack.c.l.b16 %v1300
        %v1311 = vunpack.c.l.b16 %v1301
        %v1312 = vunpack.c.l.b16 %v1302
        %v1313 = vpack.c.b16 %v1310, %v1309
        %v1314 = vpack.c.b16 %v1312, %v1311
        %v1318 = vsel %vm535, %v1303, 0
        %1320 = vmatprep.subr.bf16.mxu0 0
        %1321 = vmatpush1.bf16.msra.mxu0 %v1313
        %1322 = vmatprep.subr.bf16.mxu0 0
        %1323 = vmatpush1.bf16.msra.mxu0 %v1314
        %1324 = vmatprep.subr.bf16.mxu0 0
        %1325 = vmatpush1.bf16.msra.mxu0 0
        %1326 = vmatprep.subr.bf16.mxu0 0
        %1327 = vmatpush1.bf16.msra.mxu0 0
        %1328 = vmatprep.subr.bf16.mxu0 0
        %1329 = vmatpush1.bf16.msra.mxu0 0
        %1330 = vmatprep.subr.bf16.mxu0 0
        %1331 = vmatpush1.bf16.msra.mxu0 0
        %1332 = vmatprep.subr.bf16.mxu0 0
        %1333 = vmatpush1.bf16.msra.mxu0 0
        %1334 = vmatprep.subr.bf16.mxu0 0
        %1335 = vmatpush1.bf16.msra.mxu0 0
        %1336 = vmatprep.subr.bf16.mxu0 0
        %1337 = vmatpush1.bf16.msra.mxu0 0
        %1338 = vmatprep.subr.bf16.mxu0 0
        %1339 = vmatpush1.bf16.msra.mxu0 0
        %1340 = vmatprep.subr.bf16.mxu0 0
        %1341 = vmatpush1.bf16.msra.mxu0 0
        %1342 = vmatprep.subr.bf16.mxu0 0
        %1343 = vmatpush1.bf16.msra.mxu0 0
        %1344 = vmatprep.subr.bf16.mxu0 0
        %1345 = vmatpush1.bf16.msra.mxu0 0
        %1346 = vmatprep.subr.bf16.mxu0 0
        %1347 = vmatpush1.bf16.msra.mxu0 0
        %1348 = vmatprep.subr.bf16.mxu0 0
        %1349 = vmatpush1.bf16.msra.mxu0 0
        %1350 = vmatprep.subr.bf16.mxu0 0
        %1351 = vmatpush1.bf16.msra.mxu0 0
        %1352 = vmatprep.mubr.bf16.mxu0 0
        %1353 = vmatmul.mubr.bf16.gmra.mrb[0].mxu0 %v1318
        %v1354 = vpop.f32.mrb[0].mxu0
        %v1355 = vadd.f32 %v1304, %v1354
        %v1356 = vpop.f32.mrb[0].mxu0
        %v1357 = vpop.f32.mrb[0].mxu0
        %v1358 = vpop.f32.mrb[0].mxu0
        %1359 = vdwg.mxu0
        %v1360 = vxor.u32 %v1355, 2147483648
        %v1361 = vmul.f32 %v1360, 1.442695
        %v1362 = vpow.pop %v1361
        %v1363 = vadd.f32 %v1362, 1.0
        %v1364 = vrcp.pop %v1363
        %v1365 = vmul.f32 1.0, %v1364
        %vm1366 = vcmask 319488
        %1367 = vst.msk [vmem:[%s352] sm:$0x1] %vm1366, %v1184
        %1369 = vrot.lane.b32.xlu0 %v1365, 40
        %v1370 = vpop.permute.xlu0 %1369
        %vm1372 = vcmask 352576
        %1373 = vst.msk [vmem:[%s352] sm:$0x1] %vm1372, %v1370
        %1374 = vrot.lane.b32.xlu0 %v918, 44
        %v1375 = vpop.permute.xlu0 %1374
        %vm1377 = vcmask 483680
        %1378 = vst.msk [vmem:[%s352] sm:$0x1] %vm1377, %v1375
        %s1379 = sand.u32 %s205, 1
        %s1380 = scalar_lea.sflag [#allocation6], %s1379
        %s1381 = sand.u32 %s205, 1
        %s1382 = scalar_lea.vmem [#allocation9], %s1381
        // Predicated region
        $region57: #{tpu_custom_call.1} parent=47 // pred_check
          %p1383 = pneg %p215
        $region58: #{tpu_custom_call.1} parent=47 // pred_check_branch
          %1385 = sbr.rel (%p1383) target = $region60
        $region59: #{tpu_custom_call.1} parent=47 // pred_region
          %s1387 = ssub.s32 16, 16
          %1388 = vsyncadd %s1380, %s1387
          %s1389 = smul.addr %s25, 16
          %s1390 = scalar_lea.hbm %s7, %s1389
          %s1392 = sshll.u32 %s1382, 4
          %s1393 = int_to_ptr.vmem [resolvable:$true] %s1392
          %1395 = dma.vmem_to_hbm [thread:$0]  %s1393, 16, %s1390, %s1380
        $region60: #{tpu_custom_call.1} parent=47 // pred_fallthru
          _
      $region48: #{tpu_custom_call.1} parent=5 // pred_fallthru
        _
      %p1396 = scmp.le.s32.totalorder 2, %s20
      // Predicated region
      $region61: #{tpu_custom_call.1} parent=5 // pred_check
        %p1397 = pneg %p1396
      $region62: #{tpu_custom_call.1} parent=5 // pred_check_branch
        %1399 = sbr.rel (%p1397) target = $region64
      $region63: #{tpu_custom_call.1} parent=5 // pred_region
        %s1400 = ssub.s32 %s20, 2
        // Predicated region
        $region65: #{tpu_custom_call.1} parent=63 // pred_check
          %p1401 = pneg %p221
        $region66: #{tpu_custom_call.1} parent=63 // pred_check_branch
          %1403 = sbr.rel (%p1401) target = $region68
        $region67: #{tpu_custom_call.1} parent=63 // pred_region
          %s1404 = sand.u32 %s206, 1
          %s1405 = scalar_lea.sflag [#allocation6], %s1404
          %s1406 = sand.u32 %s206, 1
          %s1407 = scalar_lea.vmem [#allocation9], %s1406
          %1408 = dma.done %s1405, 16
        $region68: #{tpu_custom_call.1} parent=63 // pred_fallthru
          _
      $region64: #{tpu_custom_call.1} parent=5 // pred_fallthru
        _
    $region6: #{tpu_custom_call.1} parent=1 // loop_footer
      %s24 = sadd.s32 1, %s20
    $region7: #{tpu_custom_call.1} parent=1 // loop_footer_branch
      %19 = sbr.rel target = $region3
    $region8: #{tpu_custom_call.1} parent=1 // loop_exit
      _
    %1409 = vsyncpa [#allocation5], 1
    %s1410 = scalar_lea.sflag [#allocation5], 1
    %1411 = vsyncpa %s1410, 1
    %1412 = vsyncpa [#allocation8], 1
    %1413 = vsyncpa [#allocation6], 1
    %s1414 = scalar_lea.sflag [#allocation6], 1
    %1415 = vsyncpa %s1414, 1

</llo_original>
